<compile_context>
chip_gen: v7x
topology: tpu7x:2x2x1
jax: 0.10.0
libtpu: 0.0.40
codegen_flags: <defaults>
</compile_context>

<pallas_src>
import functools

import jax
import jax.numpy as jnp
from jax.experimental import pallas as pl
from jax.experimental.pallas import tpu as pltpu

_GATE_LANES = 128   # gate output packed lane-dense into 128 lanes


# ----------------------------------------------------------------------------
# per-generation tuning helpers
# ----------------------------------------------------------------------------
def _vmem_limit_and_cap():
    """Scoped-VMEM limit (~7/8 of physical, capped) and physical capacity."""
    cap = 64 * 1024 * 1024            # conservative default (v7x per-TC VMEM)
    try:
        info = pltpu.get_tpu_info()
        cap = int(getattr(info, "vmem_capacity_bytes", cap))
    except Exception:
        pass
    limit = max(32 * 1024 * 1024, min(cap * 7 // 8, 112 * 1024 * 1024))
    return limit, cap


def _pick_tile(dim, target, aligns=(128, 8)):
    """Largest divisor of `dim` that is <= target and a multiple of one of
    `aligns` (tried in order); falls back to the full dim."""
    if dim <= target:
        return dim
    for align in aligns:
        t = (target // align) * align
        while t >= align:
            if dim % t == 0:
                return t
            t -= align
    # TODO(synk): pad + mask ragged remainders here as well if real configs
    # ever hit this fallback for T / ffn_dim.
    return dim


# ----------------------------------------------------------------------------
# in-kernel helpers
# ----------------------------------------------------------------------------
def _layernorm(x, gamma, beta, eps=1e-5):
    mu = jnp.mean(x, axis=-1, keepdims=True)
    xc = x - mu
    var = jnp.mean(xc * xc, axis=-1, keepdims=True)
    return xc * jax.lax.rsqrt(var + eps) * gamma + beta


def _erf_approx(x):
    # Abramowitz & Stegun 7.1.26 (|err| <= 1.5e-7); exp + approx reciprocal
    # keep most of the work on the EUP slot.
    a1, a2, a3, a4, a5 = (0.254829592, -0.284496736, 1.421413741,
                          -1.453152027, 1.061405429)
    p = 0.3275911
    s = jnp.where(x >= 0.0, 1.0, -1.0)
    ax = jnp.abs(x)
    t = pl.reciprocal(1.0 + p * ax, approx=True)
    poly = ((((a5 * t + a4) * t + a3) * t + a2) * t + a1) * t
    return s * (1.0 - poly * jnp.exp(-ax * ax))


def _gelu_exact(x):
    # exact (erf-based) GELU, matching PyTorch ACT2FN["gelu"]
    return 0.5 * x * (1.0 + _erf_approx(x * 0.7071067811865476))


# ----------------------------------------------------------------------------
# Kernel 1: self-attention block  (LN -> fused QKV -> MHA -> out_proj -> +res)
# ----------------------------------------------------------------------------
def _self_attn_kernel(x_ref, ln_g_ref, ln_b_ref, wqkv_ref, bqkv_ref,
                      wo_ref, bo_ref, out_ref, qkv_sc, attn_sc,
                      *, num_heads, cdt):
    x = x_ref[0]                                              # (T, D) f32
    xn = _layernorm(x, ln_g_ref[...], ln_b_ref[...])
    # fused QKV projection; attention scale pre-folded into the Q columns.
    qkv = (jnp.dot(xn.astype(cdt), wqkv_ref[...],
                   preferred_element_type=jnp.float32) + bqkv_ref[...])
    qkv_sc[...] = qkv.astype(cdt)           # bound the big temp in cdt VMEM
    d = x.shape[-1]
    hd = d // num_heads

    def head_out(h):
        sl = slice(h * hd, (h + 1) * hd)
        qh = qkv_sc[:, sl]
        kh = qkv_sc[:, d + h * hd:d + (h + 1) * hd]
        vh = qkv_sc[:, 2 * d + h * hd:2 * d + (h + 1) * hd]
        s = jax.lax.dot_general(qh, kh, (((1,), (1,)), ((), ())),
                                preferred_element_type=jnp.float32)
        s = s - jnp.max(s, axis=-1, keepdims=True)
        p = jnp.exp(s)
        p = p * pl.reciprocal(jnp.sum(p, axis=-1, keepdims=True), approx=True)
        return jnp.dot(p.astype(cdt), vh, preferred_element_type=jnp.float32)

    # Heads processed in pairs: the concatenated (T, 2*hd) store is 128-lane
    # dense for Whisper head_dim=64 (v5e has a single store slot), and the
    # scratch store bounds per-head live ranges instead of keeping every
    # head's (T, T) score tile alive under full unrolling.
    if num_heads % 2 == 0:
        for h in range(0, num_heads, 2):
            o = jnp.concatenate([head_out(h), head_out(h + 1)], axis=-1)
            attn_sc[:, h * hd:(h + 2) * hd] = o.astype(cdt)
    else:
        for h in range(num_heads):
            attn_sc[:, h * hd:(h + 1) * hd] = head_out(h).astype(cdt)

    # single full-contraction out-projection (keeps the MXU at full depth)
    y = (jnp.dot(attn_sc[...], wo_ref[...], preferred_element_type=jnp.float32)
         + bo_ref[...])
    out_ref[0] = (x + y).astype(out_ref.dtype)


# ----------------------------------------------------------------------------
# Kernel 2: cross-attention block, encoder length streamed with online softmax
#   grid = (B, n_s); per S-tile fused KV projection + flash-style update.
# ----------------------------------------------------------------------------
def _cross_attn_kernel(x_ref, enc_ref, ln_g_ref, ln_b_ref, wq_ref, bq_ref,
                       wkv_ref, bkv_ref, wo_ref, bo_ref, out_ref,
                       q_sc, m_sc, l_sc, acc_sc, *, num_heads, cdt, src_len):
    s_idx = pl.program_id(1)
    d = q_sc.shape[-1]
    hd = d // num_heads

    @pl.when(s_idx == 0)
    def _init():
        xn = _layernorm(x_ref[0], ln_g_ref[...], ln_b_ref[...])
        # Q projection; attention scale pre-folded into wq/bq.
        q = (jnp.dot(xn.astype(cdt), wq_ref[...],
                     preferred_element_type=jnp.float32) + bq_ref[...])
        q_sc[...] = q.astype(cdt)
        m_sc[...] = jnp.full_like(m_sc, -jnp.inf)
        l_sc[...] = jnp.zeros_like(l_sc)
        acc_sc[...] = jnp.zeros_like(acc_sc)

    enc = enc_ref[0]                                          # (tile_s, D) cdt
    tile_s = enc.shape[0]
    # fused KV projection of this encoder tile, cast to cdt immediately
    kv = (jnp.dot(enc, wkv_ref[...], preferred_element_type=jnp.float32)
          + bkv_ref[...]).astype(cdt)                         # (tile_s, 2D)

    if src_len % tile_s:                                      # padded S tail
        key_pos = (s_idx * tile_s
                   + jax.lax.broadcasted_iota(jnp.int32, (1, tile_s), 1))
        key_mask = key_pos < src_len
    else:
        key_mask = None

    for h in range(num_heads):                                # static loop
        sl = slice(h * hd, (h + 1) * hd)
        kh = kv[:, sl]
        vh = kv[:, d + h * hd:d + (h + 1) * hd]
        s = jax.lax.dot_general(q_sc[:, sl], kh, (((1,), (1,)), ((), ())),
                                preferred_element_type=jnp.float32)
        if key_mask is not None:
            s = jnp.where(key_mask, s, -jnp.inf)
        m_prev = m_sc[:, h:h + 1]
        m_new = jnp.maximum(m_prev, jnp.max(s, axis=-1, keepdims=True))
        alpha = jnp.exp(m_prev - m_new)
        p = jnp.exp(s - m_new)
        l_sc[:, h:h + 1] = (alpha * l_sc[:, h:h + 1]
                            + jnp.sum(p, axis=-1, keepdims=True))
        acc_sc[:, sl] = alpha * acc_sc[:, sl] + jnp.dot(
            p.astype(cdt), vh, preferred_element_type=jnp.float32)
        m_sc[:, h:h + 1] = m_new

    @pl.when(s_idx == pl.num_programs(1) - 1)
    def _finalize():
        x = x_ref[0]
        for h in range(num_heads):
            sl = slice(h * hd, (h + 1) * hd)
            acc_sc[:, sl] = acc_sc[:, sl] * pl.reciprocal(
                l_sc[:, h:h + 1], approx=True)
        y = (jnp.dot(acc_sc[...].astype(cdt), wo_ref[...],
                     preferred_element_type=jnp.float32) + bo_ref[...])
        out_ref[0] = (x + y).astype(out_ref.dtype)


# ----------------------------------------------------------------------------
# Kernel 3: final LN -> CLSR gate -> (1-g)*FFN_shared + g*FFN_lang -> +res
#   grid = (B, n_t, n_f); ffn_dim streamed tile-by-tile through a fused
#   [fc1_shared | fc1_lang] matmul and a fused fc2 accumulation.
# ----------------------------------------------------------------------------
def _clsr_ffn_kernel(x_ref, ln_g_ref, ln_b_ref,
                     wgi_ref, bgi_ref, wgo_ref,
                     w1p_ref, b1p_ref, w2p_ref, b2s_ref, b2l_ref,
                     out_ref, gate_ref,
                     xn_sc, g_sc, gmix_sc, acc_sc, *, tile_f, cdt):
    j = pl.program_id(2)

    @pl.when(j == 0)
    def _init():
        x = x_ref[0]
        xn = _layernorm(x, ln_g_ref[...], ln_b_ref[...])
        xn_sc[...] = xn.astype(cdt)
        # CLSR gate MLP in f32 (tiny: gate_dim << D) so the hard threshold
        # G >= 0 is stable; eval path: dropout identity, hard gate.
        hg = jnp.maximum(
            jnp.dot(xn, wgi_ref[...], preferred_element_type=jnp.float32)
            + bgi_ref[...], 0.0)
        G = jnp.sum(hg * wgo_ref[...], axis=-1, keepdims=True)   # (tile_t, 1)
        g = (G >= 0.0).astype(jnp.float32)
        g_sc[...] = g
        # lane-dense gate store (broadcast into 128 lanes; wrapper takes lane 0)
        gate_ref[0] = jnp.broadcast_to(g, (g.shape[0], _GATE_LANES))
        # hoist the j-invariant gate mix [1-g | g] (exact 0/1 values) once
        col = jax.lax.broadcasted_iota(jnp.int32, (g.shape[0], 2 * tile_f), 1)
        gmix_sc[...] = jnp.where(col < tile_f, 1.0 - g, g).astype(cdt)
        acc_sc[...] = jnp.zeros_like(acc_sc)

    # ---- per-ffn-dim tile: fused [fc1_s | fc1_l] then fused fc2 accumulate --
    h = _gelu_exact(
        jnp.dot(xn_sc[...], w1p_ref[0], preferred_element_type=jnp.float32)
        + b1p_ref[0])                                            # (tile_t, 2tf)
    acc_sc[...] += jnp.dot(h.astype(cdt) * gmix_sc[...], w2p_ref[0],
                           preferred_element_type=jnp.float32)   # (tile_t, D)

    @pl.when(j == pl.num_programs(2) - 1)
    def _finalize():
        x = x_ref[0]
        g = g_sc[...]
        y = acc_sc[...] + (1.0 - g) * b2s_ref[...] + g * b2l_ref[...]
        out_ref[0] = (x + y).astype(out_ref.dtype)


# ----------------------------------------------------------------------------
# Python wrappers (BlockSpecs + pallas_call)
# ----------------------------------------------------------------------------
def _const_spec(shape, n_grid_axes):
    zero = (0,) * len(shape)
    if n_grid_axes == 1:
        return pl.BlockSpec(shape, lambda b: zero)
    if n_grid_axes == 2:
        return pl.BlockSpec(shape, lambda b, s: zero)
    return pl.BlockSpec(shape, lambda b, t, j: zero)


def self_attention_block(x, p, num_heads, vmem_limit):
    B, T, D = x.shape
    cdt = p["wqkv"].dtype
    kernel = functools.partial(_self_attn_kernel, num_heads=num_heads, cdt=cdt)
    return pl.pallas_call(
        kernel,
        out_shape=jax.ShapeDtypeStruct((B, T, D), x.dtype),
        grid=(B,),
        in_specs=[
            pl.BlockSpec((1, T, D), lambda b: (b, 0, 0)),
            _const_spec((1, D), 1), _const_spec((1, D), 1),          # LN
            _const_spec((D, 3 * D), 1), _const_spec((1, 3 * D), 1),  # fused QKV
            _const_spec((D, D), 1), _const_spec((1, D), 1),          # out proj
        ],
        out_specs=pl.BlockSpec((1, T, D), lambda b: (b, 0, 0)),
        scratch_shapes=[pltpu.VMEM((T, 3 * D), cdt),   # fused QKV in cdt
                        pltpu.VMEM((T, D), cdt)],      # per-head outputs
        compiler_params=pltpu.CompilerParams(
            dimension_semantics=("parallel",),
            vmem_limit_bytes=vmem_limit),
    )(x, p["ln_g"], p["ln_b"], p["wqkv"], p["bqkv"], p["wo"], p["bo"])


def cross_attention_block(x, enc, p, num_heads, vmem_limit, tile_s_target=512):
    B, T, D = x.shape
    S = enc.shape[1]
    cdt = p["wkv"].dtype
    tile_s = min(S, tile_s_target)
    s_pad = -(-S // tile_s) * tile_s
    if s_pad != S:                       # zero-pad ragged S; kernel masks -inf
        enc = jnp.pad(enc, ((0, 0), (0, s_pad - S), (0, 0)))
    n_s = s_pad // tile_s
    kernel = functools.partial(_cross_attn_kernel, num_heads=num_heads,
                               cdt=cdt, src_len=S)
    return pl.pallas_call(
        kernel,
        out_shape=jax.ShapeDtypeStruct((B, T, D), x.dtype),
        grid=(B, n_s),
        in_specs=[
            pl.BlockSpec((1, T, D), lambda b, s: (b, 0, 0)),
            pl.BlockSpec((1, tile_s, D), lambda b, s: (b, s, 0)),    # enc tile
            _const_spec((1, D), 2), _const_spec((1, D), 2),          # LN
            _const_spec((D, D), 2), _const_spec((1, D), 2),          # Q
            _const_spec((D, 2 * D), 2), _const_spec((1, 2 * D), 2),  # fused KV
            _const_spec((D, D), 2), _const_spec((1, D), 2),          # out proj
        ],
        out_specs=pl.BlockSpec((1, T, D), lambda b, s: (b, 0, 0)),
        scratch_shapes=[pltpu.VMEM((T, D), cdt),                  # Q (scaled)
                        pltpu.VMEM((T, num_heads), jnp.float32),  # running max
                        pltpu.VMEM((T, num_heads), jnp.float32),  # running sum
                        pltpu.VMEM((T, D), jnp.float32)],         # acc (f32)
        compiler_params=pltpu.CompilerParams(
            dimension_semantics=("parallel", "arbitrary"),
            vmem_limit_bytes=vmem_limit),
    )(x, enc, p["ln_g"], p["ln_b"], p["wq"], p["bq"], p["wkv"], p["bkv"],
      p["wo"], p["bo"])


def clsr_ffn_block(x, p, tile_t, tile_f, vmem_limit):
    B, T, D = x.shape
    gate_dim = p["w_gi"].shape[1]
    nf = p["w1p"].shape[0]
    nt = T // tile_t
    cdt = p["w1p"].dtype
    kernel = functools.partial(_clsr_ffn_kernel, tile_f=tile_f, cdt=cdt)
    out, gate3 = pl.pallas_call(
        kernel,
        out_shape=(jax.ShapeDtypeStruct((B, T, D), x.dtype),
                   jax.ShapeDtypeStruct((B, T, _GATE_LANES), jnp.float32)),
        grid=(B, nt, nf),
        in_specs=[
            pl.BlockSpec((1, tile_t, D), lambda b, t, j: (b, t, 0)),
            _const_spec((1, D), 3), _const_spec((1, D), 3),          # final LN
            _const_spec((D, gate_dim), 3), _const_spec((1, gate_dim), 3),
            _const_spec((1, gate_dim), 3),                           # gate MLP
            pl.BlockSpec((1, D, 2 * tile_f), lambda b, t, j: (j, 0, 0)),
            pl.BlockSpec((1, 1, 2 * tile_f), lambda b, t, j: (j, 0, 0)),
            pl.BlockSpec((1, 2 * tile_f, D), lambda b, t, j: (j, 0, 0)),
            _const_spec((1, D), 3), _const_spec((1, D), 3),          # b2s, b2l
        ],
        out_specs=(pl.BlockSpec((1, tile_t, D), lambda b, t, j: (b, t, 0)),
                   pl.BlockSpec((1, tile_t, _GATE_LANES),
                                lambda b, t, j: (b, t, 0))),
        scratch_shapes=[pltpu.VMEM((tile_t, D), cdt),            # LN(x) in cdt
                        pltpu.VMEM((tile_t, 1), jnp.float32),    # gate g
                        pltpu.VMEM((tile_t, 2 * tile_f), cdt),   # gate mix
                        pltpu.VMEM((tile_t, D), jnp.float32)],   # fc2 acc
        compiler_params=pltpu.CompilerParams(
            dimension_semantics=("parallel", "parallel", "arbitrary"),
            vmem_limit_bytes=vmem_limit),
    )(x, p["ln_g"], p["ln_b"], p["w_gi"], p["b_gi"], p["w_go"],
      p["w1p"], p["b1p"], p["w2p"], p["b2s"], p["b2l"])
    return out, gate3[:, :, 0]


# ----------------------------------------------------------------------------
# parameter fusion / packing (wrapper-side, plain JAX)
# ----------------------------------------------------------------------------
def _fuse_self_attn_params(p, cdt, num_heads):
    D = p["wq"].shape[0]
    scale = float((D // num_heads) ** -0.5)
    zeros = jnp.zeros((1, D), jnp.float32)
    wqkv = jnp.concatenate([p["wq"].astype(jnp.float32) * scale,
                            p["wk"].astype(jnp.float32),
                            p["wv"].astype(jnp.float32)], axis=1).astype(cdt)
    bqkv = jnp.concatenate([p["bq"].astype(jnp.float32) * scale, zeros,
                            p["bv"].astype(jnp.float32)], axis=1)
    return dict(ln_g=p["ln_g"], ln_b=p["ln_b"], wqkv=wqkv, bqkv=bqkv,
                wo=p["wo"].astype(cdt), bo=p["bo"])


def _fuse_cross_attn_params(p, cdt, num_heads):
    D = p["wq"].shape[0]
    scale = float((D // num_heads) ** -0.5)
    zeros = jnp.zeros((1, D), jnp.float32)
    return dict(
        ln_g=p["ln_g"], ln_b=p["ln_b"],
        wq=(p["wq"].astype(jnp.float32) * scale).astype(cdt),
        bq=p["bq"].astype(jnp.float32) * scale,
        wkv=jnp.concatenate([p["wk"].astype(jnp.float32),
                             p["wv"].astype(jnp.float32)], axis=1).astype(cdt),
        bkv=jnp.concatenate([zeros, p["bv"].astype(jnp.float32)], axis=1),
        wo=p["wo"].astype(cdt), bo=p["bo"])


def _pack_ffn_params(p, cdt, tile_f):
    D, F = p["w1s"].shape
    nf = F // tile_f

    def fc1(w):    # (D, F) -> (nf, D, tf)
        return w.astype(jnp.float32).reshape(D, nf, tile_f).transpose(1, 0, 2)

    def fc2(w):    # (F, D) -> (nf, tf, D)
        return w.astype(jnp.float32).reshape(nf, tile_f, D)

    w1p = jnp.concatenate([fc1(p["w1s"]), fc1(p["w1l"])], axis=-1).astype(cdt)
    b1p = jnp.concatenate(
        [p["b1s"].astype(jnp.float32).reshape(nf, 1, tile_f),
         p["b1l"].astype(jnp.float32).reshape(nf, 1, tile_f)], axis=-1)
    w2p = jnp.concatenate([fc2(p["w2s"]), fc2(p["w2l"])], axis=1).astype(cdt)
    return dict(
        ln_g=p["ln_g"], ln_b=p["ln_b"],
        w_gi=p["w_gi"].astype(jnp.float32),   # gate MLP stays f32 (tiny)
        b_gi=p["b_gi"], w_go=p["w_go"],
        w1p=w1p, b1p=b1p, w2p=w2p, b2s=p["b2s"], b2l=p["b2l"])


def distil_whisper_decoder_layer(hidden_states, encoder_hidden_states, params,
                                 num_heads, compute_dtype=jnp.bfloat16):
    """Forward of DistilWhisperDecoderLayer (eval, no mask, no KV cache)."""
    B, T, D = hidden_states.shape
    ffn_dim = params["ffn"]["w1s"].shape[1]

    vmem_limit, vmem_cap = _vmem_limit_and_cap()
    big_vmem = vmem_cap >= 96 * 1024 * 1024          # v5e/v6e vs v7x
    tile_f = _pick_tile(ffn_dim, 1024 if big_vmem else 512, aligns=(128,))
    tile_t = _pick_tile(T, 256, aligns=(8,))

    p_self = _fuse_self_attn_params(params["self_attn"], compute_dtype,
                                    num_heads)
    p_cross = _fuse_cross_attn_params(params["cross_attn"], compute_dtype,
                                      num_heads)
    p_ffn = _pack_ffn_params(params["ffn"], compute_dtype, tile_f)

    # cast encoder states once (reused by every layer; kernel consumes cdt)
    enc = encoder_hidden_states.astype(compute_dtype)

    h = self_attention_block(hidden_states, p_self, num_heads, vmem_limit)
    h = cross_attention_block(h, enc, p_cross, num_heads, vmem_limit)
    out, gate = clsr_ffn_block(h, p_ffn, tile_t, tile_f, vmem_limit)
    # TODO(synk): present_key_value (KV cache) / attention-prob outputs are
    # omitted (use_cache=False, output_attentions=False inference path).
    return out, gate


# ----------------------------------------------------------------------------
# deterministic synthetic parameters (shapes from the module __init__)
# ----------------------------------------------------------------------------
def init_params(key, D, ffn_dim, gate_dim):
    ks = iter(jax.random.split(key, 64))

    def mat(shape, std=0.08):
        return jax.random.normal(next(ks), shape, jnp.float32) * std

    def attn_params():
        return dict(
            ln_g=1.0 + 0.1 * mat((1, D), 1.0), ln_b=0.1 * mat((1, D), 1.0),
            wq=mat((D, D)), bq=mat((1, D)),
            wk=mat((D, D)),
            wv=mat((D, D)), bv=mat((1, D)),
            wo=mat((D, D)), bo=mat((1, D)))

    ffn_params = dict(
        ln_g=1.0 + 0.1 * mat((1, D), 1.0), ln_b=0.1 * mat((1, D), 1.0),
        # gate weights are random (not the module's zero init) so both FFN
        # branches are exercised; magnitudes chosen so |G| is rarely near 0.
        w_gi=mat((D, gate_dim), 0.15), b_gi=mat((1, gate_dim), 0.3),
        w_go=mat((1, gate_dim), 0.5),
        w1s=mat((D, ffn_dim)), b1s=mat((1, ffn_dim)),
        w2s=mat((ffn_dim, D)), b2s=mat((1, D)),
        w1l=mat((D, ffn_dim)), b1l=mat((1, ffn_dim)),
        w2l=mat((ffn_dim, D)), b2l=mat((1, D)))
    return dict(self_attn=attn_params(), cross_attn=attn_params(),
                ffn=ffn_params)


def cast_matmul_weights(params, dtype):
    """Cast the large matmul weights to `dtype`; biases / LN / gate MLP stay f32."""
    def cast(p, names):
        return {k: (v.astype(dtype) if k in names else v) for k, v in p.items()}
    attn_names = {"wq", "wk", "wv", "wo"}
    ffn_names = {"w1s", "w1l", "w2s", "w2l"}
    return dict(self_attn=cast(params["self_attn"], attn_names),
                cross_attn=cast(params["cross_attn"], attn_names),
                ffn=cast(params["ffn"], ffn_names))


# ----------------------------------------------------------------------------
# pure-JAX reference (same eval-mode semantics, f32 math on the same weights)
# ----------------------------------------------------------------------------
def _ref_ln(x, g, b, eps=1e-5):
    mu = jnp.mean(x, -1, keepdims=True)
    var = jnp.mean((x - mu) ** 2, -1, keepdims=True)
    return (x - mu) / jnp.sqrt(var + eps) * g + b


def _f32(w):
    return w.astype(jnp.float32)


def _ref_attn_block(x, kv_src, p, H):
    # kv_src is None -> self-attention (keys/values from the LayerNorm'd input,
    # exactly as WhisperAttention is invoked inside the PyTorch module).
    B, T, D = x.shape
    hd = D // H
    xn = _ref_ln(x, p["ln_g"], p["ln_b"])
    kv = xn if kv_src is None else kv_src
    S = kv.shape[1]
    q = (xn @ _f32(p["wq"]) + p["bq"]) * (hd ** -0.5)
    k = kv @ _f32(p["wk"])
    v = kv @ _f32(p["wv"]) + p["bv"]
    q = q.reshape(B, T, H, hd).transpose(0, 2, 1, 3)
    k = k.reshape(B, S, H, hd).transpose(0, 2, 1, 3)
    v = v.reshape(B, S, H, hd).transpose(0, 2, 1, 3)
    a = jax.nn.softmax(jnp.einsum("bhtd,bhsd->bhts", q, k), axis=-1)
    o = jnp.einsum("bhts,bhsd->bhtd", a, v)
    o = o.transpose(0, 2, 1, 3).reshape(B, T, D)
    return x + (o @ _f32(p["wo"]) + p["bo"])


def _ref_clsr_ffn(x, p):
    xn = _ref_ln(x, p["ln_g"], p["ln_b"])
    hg = jax.nn.relu(xn @ _f32(p["w_gi"]) + p["b_gi"])
    G = jnp.sum(hg * p["w_go"], axis=-1, keepdims=True)
    g = (G >= 0.0).astype(jnp.float32)

    def ffn(w1, b1, w2, b2):
        return jax.nn.gelu(xn @ _f32(w1) + b1, approximate=False) @ _f32(w2) + b2

    h_s = ffn(p["w1s"], p["b1s"], p["w2s"], p["b2s"])
    h_l = ffn(p["w1l"], p["b1l"], p["w2l"], p["b2l"])
    return x + (1.0 - g) * h_s + g * h_l, g[..., 0], G[..., 0]


def reference_layer(x, enc, params, H):
    h = _ref_attn_block(x, None, params["self_attn"], H)
    h = _ref_attn_block(h, enc, params["cross_attn"], H)
    return _ref_clsr_ffn(h, params["ffn"])


# ----------------------------------------------------------------------------
if __name__ == "__main__":
    B, T, S, D = 2, 8, 16, 32         # batch, tgt seq, enc seq, d_model
    H, FFN_DIM, GATE_DIM = 4, 64, 16  # heads, decoder_ffn_dim, clsr_gate_dim

    key = jax.random.PRNGKey(0)
    k_x, k_enc, k_p = jax.random.split(key, 3)
    hidden_states = jax.random.normal(k_x, (B, T, D), jnp.float32)
    encoder_hidden_states = jax.random.normal(k_enc, (B, S, D), jnp.float32)

    # bf16 matmul weights (shared by kernel and reference -> identical values)
    params = cast_matmul_weights(init_params(k_p, D, FFN_DIM, GATE_DIM),
                                 jnp.bfloat16)

    out, gate = distil_whisper_decoder_layer(
        hidden_states, encoder_hidden_states, params, H,
        compute_dtype=jnp.bfloat16)
    out = jax.block_until_ready(out)
    gate = jax.block_until_ready(gate)

    ref_out, ref_gate, ref_G = reference_layer(
        hidden_states, encoder_hidden_states, params, H)

    assert out.shape == (B, T, D) and gate.shape == (B, T)

    # The gate is a hard threshold on G; its input goes through bf16 attention
    # blocks, so only tokens whose reference |G| is clearly away from 0 have a
    # numerically well-defined gate (the gate MLP itself runs in f32).
    safe = jnp.abs(ref_G) > 5e-2
    assert bool(jnp.mean(safe.astype(jnp.float32)) > 0.5)
    assert bool(jnp.all(jnp.where(safe, gate == ref_gate, True))), "gate mismatch"

    mask = (safe & (gate == ref_gate))[..., None]
    diff = jnp.where(mask, jnp.abs(out - ref_out), 0.0)
    tol = 5e-2 + 5e-2 * jnp.abs(jnp.where(mask, ref_out, 0.0))
    assert bool(jnp.all(diff <= tol)), "output mismatch"

    print("KERNEL_OK")
</pallas_src>

<mosaic_0001>
module attributes {stable_mosaic.version = 11 : i64} {
  func.func @_self_attn_kernel(%arg0: i32, %arg1: memref<1x8x32xf32, #tpu.memory_space<vmem>>, %arg2: memref<1x32xf32, #tpu.memory_space<vmem>>, %arg3: memref<1x32xf32, #tpu.memory_space<vmem>>, %arg4: memref<32x96xbf16, #tpu.memory_space<vmem>>, %arg5: memref<1x96xf32, #tpu.memory_space<vmem>>, %arg6: memref<32x32xbf16, #tpu.memory_space<vmem>>, %arg7: memref<1x32xf32, #tpu.memory_space<vmem>>, %arg8: memref<1x8x32xf32, #tpu.memory_space<vmem>>, %arg9: memref<8x96xbf16, #tpu.memory_space<vmem>>, %arg10: memref<8x32xbf16, #tpu.memory_space<vmem>>) attributes {dimension_semantics = [#tpu.dimension_semantics<parallel>], iteration_bounds = array<i64: 2>, scalar_prefetch = 0 : i64, scratch_operands = 2 : i64, tpu.core_type = #tpu.core_type<tc>, window_params = [{transform_indices = @transform_0, window_bounds = array<i64: 1, 8, 32>}, {pipeline_mode = #tpu.pipeline_mode<synchronous>, transform_indices = @transform_1, window_bounds = array<i64: 1, 32>}, {pipeline_mode = #tpu.pipeline_mode<synchronous>, transform_indices = @transform_2, window_bounds = array<i64: 1, 32>}, {pipeline_mode = #tpu.pipeline_mode<synchronous>, transform_indices = @transform_3, window_bounds = array<i64: 32, 96>}, {pipeline_mode = #tpu.pipeline_mode<synchronous>, transform_indices = @transform_4, window_bounds = array<i64: 1, 96>}, {pipeline_mode = #tpu.pipeline_mode<synchronous>, transform_indices = @transform_5, window_bounds = array<i64: 32, 32>}, {pipeline_mode = #tpu.pipeline_mode<synchronous>, transform_indices = @transform_6, window_bounds = array<i64: 1, 32>}, {transform_indices = @transform_7, window_bounds = array<i64: 1, 8, 32>}]} {
    %c0 = arith.constant 0 : index
    %c0_0 = arith.constant 0 : index
    %c0_1 = arith.constant 0 : index
    %0 = vector.load %arg1[%c0, %c0_0, %c0_1] : memref<1x8x32xf32, #tpu.memory_space<vmem>>, vector<1x8x32xf32>
    %1 = vector.shape_cast %0 : vector<1x8x32xf32> to vector<8x32xf32>
    %c0_2 = arith.constant 0 : index
    %c0_3 = arith.constant 0 : index
    %2 = vector.load %arg2[%c0_2, %c0_3] : memref<1x32xf32, #tpu.memory_space<vmem>>, vector<1x32xf32>
    %c0_4 = arith.constant 0 : index
    %c0_5 = arith.constant 0 : index
    %3 = vector.load %arg3[%c0_4, %c0_5] : memref<1x32xf32, #tpu.memory_space<vmem>>, vector<1x32xf32>
    %cst = arith.constant dense<0.000000e+00> : vector<8xf32>
    %4 = vector.multi_reduction <add>, %1, %cst [1] : vector<8x32xf32> to vector<8xf32>
    %5 = vector.shape_cast %4 : vector<8xf32> to vector<8x1xf32>
    %cst_6 = arith.constant 3.200000e+01 : f32
    %6 = vector.broadcast %cst_6 : f32 to vector<8x1xf32>
    %7 = arith.divf %5, %6 : vector<8x1xf32>
    %8 = vector.broadcast %7 : vector<8x1xf32> to vector<8x32xf32>
    %9 = arith.subf %1, %8 : vector<8x32xf32>
    %10 = arith.mulf %9, %9 : vector<8x32xf32>
    %cst_7 = arith.constant dense<0.000000e+00> : vector<8xf32>
    %11 = vector.multi_reduction <add>, %10, %cst_7 [1] : vector<8x32xf32> to vector<8xf32>
    %12 = vector.shape_cast %11 : vector<8xf32> to vector<8x1xf32>
    %cst_8 = arith.constant 3.200000e+01 : f32
    %13 = vector.broadcast %cst_8 : f32 to vector<8x1xf32>
    %14 = arith.divf %12, %13 : vector<8x1xf32>
    %cst_9 = arith.constant 9.99999974E-6 : f32
    %15 = vector.broadcast %cst_9 : f32 to vector<8x1xf32>
    %16 = arith.addf %14, %15 : vector<8x1xf32>
    %17 = math.rsqrt %16 : vector<8x1xf32>
    %18 = vector.broadcast %17 : vector<8x1xf32> to vector<8x32xf32>
    %19 = arith.mulf %9, %18 : vector<8x32xf32>
    %20 = vector.broadcast %2 : vector<1x32xf32> to vector<8x32xf32>
    %21 = arith.mulf %19, %20 : vector<8x32xf32>
    %22 = vector.broadcast %3 : vector<1x32xf32> to vector<8x32xf32>
    %23 = arith.addf %21, %22 : vector<8x32xf32>
    %24 = arith.truncf %23 : vector<8x32xf32> to vector<8x32xbf16>
    %c0_10 = arith.constant 0 : index
    %c0_11 = arith.constant 0 : index
    %25 = vector.load %arg4[%c0_10, %c0_11] : memref<32x96xbf16, #tpu.memory_space<vmem>>, vector<32x96xbf16>
    %cst_12 = arith.constant dense<0.000000e+00> : vector<8x96xf32>
    %26 = tpu.matmul %24, %25, %cst_12 {dimension_numbers = #tpu.dot_dimension_numbers<[1], [0], [0], [1], [0, 0, 1, 1], [], []>} : vector<8x32xbf16>, vector<32x96xbf16>, vector<8x96xf32> -> vector<8x96xf32>
    %c0_13 = arith.constant 0 : index
    %c0_14 = arith.constant 0 : index
    %27 = vector.load %arg5[%c0_13, %c0_14] : memref<1x96xf32, #tpu.memory_space<vmem>>, vector<1x96xf32>
    %28 = vector.broadcast %27 : vector<1x96xf32> to vector<8x96xf32>
    %29 = arith.addf %26, %28 : vector<8x96xf32>
    %30 = arith.truncf %29 : vector<8x96xf32> to vector<8x96xbf16>
    %c0_15 = arith.constant 0 : index
    %c0_16 = arith.constant 0 : index
    %31 = vector.load %arg9[%c0_15, %c0_16] : memref<8x96xbf16, #tpu.memory_space<vmem>>, vector<8x96xbf16>
    tpu.vector_store %arg9[%c0_15, %c0_16], %30 {strides = array<i32>} : memref<8x96xbf16, #tpu.memory_space<vmem>>, vector<8x96xbf16>,
    %c0_17 = arith.constant 0 : index
    %c0_18 = arith.constant 0 : index
    %32 = vector.load %arg9[%c0_17, %c0_18] : memref<8x96xbf16, #tpu.memory_space<vmem>>, vector<8x8xbf16>
    %c0_19 = arith.constant 0 : index
    %c32 = arith.constant 32 : index
    %33 = vector.load %arg9[%c0_19, %c32] : memref<8x96xbf16, #tpu.memory_space<vmem>>, vector<8x8xbf16>
    %c0_20 = arith.constant 0 : index
    %c64 = arith.constant 64 : index
    %34 = vector.load %arg9[%c0_20, %c64] : memref<8x96xbf16, #tpu.memory_space<vmem>>, vector<8x8xbf16>
    %cst_21 = arith.constant dense<0.000000e+00> : vector<8x8xf32>
    %35 = tpu.matmul %32, %33, %cst_21 {dimension_numbers = #tpu.dot_dimension_numbers<[1], [1], [0], [0], [0, 0, 1, 0], [], []>} : vector<8x8xbf16>, vector<8x8xbf16>, vector<8x8xf32> -> vector<8x8xf32>
    %cst_22 = arith.constant dense<0xFF800000> : vector<8xf32>
    %36 = vector.multi_reduction <maximumf>, %35, %cst_22 [1] : vector<8x8xf32> to vector<8xf32>
    %37 = vector.shape_cast %36 : vector<8xf32> to vector<8x1xf32>
    %38 = vector.broadcast %37 : vector<8x1xf32> to vector<8x8xf32>
    %39 = arith.subf %35, %38 : vector<8x8xf32>
    %40 = math.exp %39 : vector<8x8xf32>
    %cst_23 = arith.constant dense<0.000000e+00> : vector<8xf32>
    %41 = vector.multi_reduction <add>, %40, %cst_23 [1] : vector<8x8xf32> to vector<8xf32>
    %42 = vector.shape_cast %41 : vector<8xf32> to vector<8x1xf32>
    %43 = tpu.reciprocal %42 {approx = true} : vector<8x1xf32> -> vector<8x1xf32>
    %44 = vector.broadcast %43 : vector<8x1xf32> to vector<8x8xf32>
    %45 = arith.mulf %40, %44 : vector<8x8xf32>
    %46 = arith.truncf %45 : vector<8x8xf32> to vector<8x8xbf16>
    %cst_24 = arith.constant dense<0.000000e+00> : vector<8x8xf32>
    %47 = tpu.matmul %46, %34, %cst_24 {dimension_numbers = #tpu.dot_dimension_numbers<[1], [0], [0], [1], [0, 0, 1, 1], [], []>} : vector<8x8xbf16>, vector<8x8xbf16>, vector<8x8xf32> -> vector<8x8xf32>
    %c0_25 = arith.constant 0 : index
    %c8 = arith.constant 8 : index
    %48 = vector.load %arg9[%c0_25, %c8] : memref<8x96xbf16, #tpu.memory_space<vmem>>, vector<8x8xbf16>
    %c0_26 = arith.constant 0 : index
    %c40 = arith.constant 40 : index
    %49 = vector.load %arg9[%c0_26, %c40] : memref<8x96xbf16, #tpu.memory_space<vmem>>, vector<8x8xbf16>
    %c0_27 = arith.constant 0 : index
    %c72 = arith.constant 72 : index
    %50 = vector.load %arg9[%c0_27, %c72] : memref<8x96xbf16, #tpu.memory_space<vmem>>, vector<8x8xbf16>
    %cst_28 = arith.constant dense<0.000000e+00> : vector<8x8xf32>
    %51 = tpu.matmul %48, %49, %cst_28 {dimension_numbers = #tpu.dot_dimension_numbers<[1], [1], [0], [0], [0, 0, 1, 0], [], []>} : vector<8x8xbf16>, vector<8x8xbf16>, vector<8x8xf32> -> vector<8x8xf32>
    %cst_29 = arith.constant dense<0xFF800000> : vector<8xf32>
    %52 = vector.multi_reduction <maximumf>, %51, %cst_29 [1] : vector<8x8xf32> to vector<8xf32>
    %53 = vector.shape_cast %52 : vector<8xf32> to vector<8x1xf32>
    %54 = vector.broadcast %53 : vector<8x1xf32> to vector<8x8xf32>
    %55 = arith.subf %51, %54 : vector<8x8xf32>
    %56 = math.exp %55 : vector<8x8xf32>
    %cst_30 = arith.constant dense<0.000000e+00> : vector<8xf32>
    %57 = vector.multi_reduction <add>, %56, %cst_30 [1] : vector<8x8xf32> to vector<8xf32>
    %58 = vector.shape_cast %57 : vector<8xf32> to vector<8x1xf32>
    %59 = tpu.reciprocal %58 {approx = true} : vector<8x1xf32> -> vector<8x1xf32>
    %60 = vector.broadcast %59 : vector<8x1xf32> to vector<8x8xf32>
    %61 = arith.mulf %56, %60 : vector<8x8xf32>
    %62 = arith.truncf %61 : vector<8x8xf32> to vector<8x8xbf16>
    %cst_31 = arith.constant dense<0.000000e+00> : vector<8x8xf32>
    %63 = tpu.matmul %62, %50, %cst_31 {dimension_numbers = #tpu.dot_dimension_numbers<[1], [0], [0], [1], [0, 0, 1, 1], [], []>} : vector<8x8xbf16>, vector<8x8xbf16>, vector<8x8xf32> -> vector<8x8xf32>
    %64 = tpu.concatenate %47, %63 in 1 : vector<8x8xf32>, vector<8x8xf32> -> vector<8x16xf32>
    %65 = arith.truncf %64 : vector<8x16xf32> to vector<8x16xbf16>
    %c0_32 = arith.constant 0 : index
    %c0_33 = arith.constant 0 : index
    %66 = vector.load %arg10[%c0_32, %c0_33] : memref<8x32xbf16, #tpu.memory_space<vmem>>, vector<8x16xbf16>
    tpu.vector_store %arg10[%c0_32, %c0_33], %65 {strides = array<i32>} : memref<8x32xbf16, #tpu.memory_space<vmem>>, vector<8x16xbf16>,
    %c0_34 = arith.constant 0 : index
    %c16 = arith.constant 16 : index
    %67 = vector.load %arg9[%c0_34, %c16] : memref<8x96xbf16, #tpu.memory_space<vmem>>, vector<8x8xbf16>
    %c0_35 = arith.constant 0 : index
    %c48 = arith.constant 48 : index
    %68 = vector.load %arg9[%c0_35, %c48] : memref<8x96xbf16, #tpu.memory_space<vmem>>, vector<8x8xbf16>
    %c0_36 = arith.constant 0 : index
    %c80 = arith.constant 80 : index
    %69 = vector.load %arg9[%c0_36, %c80] : memref<8x96xbf16, #tpu.memory_space<vmem>>, vector<8x8xbf16>
    %cst_37 = arith.constant dense<0.000000e+00> : vector<8x8xf32>
    %70 = tpu.matmul %67, %68, %cst_37 {dimension_numbers = #tpu.dot_dimension_numbers<[1], [1], [0], [0], [0, 0, 1, 0], [], []>} : vector<8x8xbf16>, vector<8x8xbf16>, vector<8x8xf32> -> vector<8x8xf32>
    %cst_38 = arith.constant dense<0xFF800000> : vector<8xf32>
    %71 = vector.multi_reduction <maximumf>, %70, %cst_38 [1] : vector<8x8xf32> to vector<8xf32>
    %72 = vector.shape_cast %71 : vector<8xf32> to vector<8x1xf32>
    %73 = vector.broadcast %72 : vector<8x1xf32> to vector<8x8xf32>
    %74 = arith.subf %70, %73 : vector<8x8xf32>
    %75 = math.exp %74 : vector<8x8xf32>
    %cst_39 = arith.constant dense<0.000000e+00> : vector<8xf32>
    %76 = vector.multi_reduction <add>, %75, %cst_39 [1] : vector<8x8xf32> to vector<8xf32>
    %77 = vector.shape_cast %76 : vector<8xf32> to vector<8x1xf32>
    %78 = tpu.reciprocal %77 {approx = true} : vector<8x1xf32> -> vector<8x1xf32>
    %79 = vector.broadcast %78 : vector<8x1xf32> to vector<8x8xf32>
    %80 = arith.mulf %75, %79 : vector<8x8xf32>
    %81 = arith.truncf %80 : vector<8x8xf32> to vector<8x8xbf16>
    %cst_40 = arith.constant dense<0.000000e+00> : vector<8x8xf32>
    %82 = tpu.matmul %81, %69, %cst_40 {dimension_numbers = #tpu.dot_dimension_numbers<[1], [0], [0], [1], [0, 0, 1, 1], [], []>} : vector<8x8xbf16>, vector<8x8xbf16>, vector<8x8xf32> -> vector<8x8xf32>
    %c0_41 = arith.constant 0 : index
    %c24 = arith.constant 24 : index
    %83 = vector.load %arg9[%c0_41, %c24] : memref<8x96xbf16, #tpu.memory_space<vmem>>, vector<8x8xbf16>
    %c0_42 = arith.constant 0 : index
    %c56 = arith.constant 56 : index
    %84 = vector.load %arg9[%c0_42, %c56] : memref<8x96xbf16, #tpu.memory_space<vmem>>, vector<8x8xbf16>
    %c0_43 = arith.constant 0 : index
    %c88 = arith.constant 88 : index
    %85 = vector.load %arg9[%c0_43, %c88] : memref<8x96xbf16, #tpu.memory_space<vmem>>, vector<8x8xbf16>
    %cst_44 = arith.constant dense<0.000000e+00> : vector<8x8xf32>
    %86 = tpu.matmul %83, %84, %cst_44 {dimension_numbers = #tpu.dot_dimension_numbers<[1], [1], [0], [0], [0, 0, 1, 0], [], []>} : vector<8x8xbf16>, vector<8x8xbf16>, vector<8x8xf32> -> vector<8x8xf32>
    %cst_45 = arith.constant dense<0xFF800000> : vector<8xf32>
    %87 = vector.multi_reduction <maximumf>, %86, %cst_45 [1] : vector<8x8xf32> to vector<8xf32>
    %88 = vector.shape_cast %87 : vector<8xf32> to vector<8x1xf32>
    %89 = vector.broadcast %88 : vector<8x1xf32> to vector<8x8xf32>
    %90 = arith.subf %86, %89 : vector<8x8xf32>
    %91 = math.exp %90 : vector<8x8xf32>
    %cst_46 = arith.constant dense<0.000000e+00> : vector<8xf32>
    %92 = vector.multi_reduction <add>, %91, %cst_46 [1] : vector<8x8xf32> to vector<8xf32>
    %93 = vector.shape_cast %92 : vector<8xf32> to vector<8x1xf32>
    %94 = tpu.reciprocal %93 {approx = true} : vector<8x1xf32> -> vector<8x1xf32>
    %95 = vector.broadcast %94 : vector<8x1xf32> to vector<8x8xf32>
    %96 = arith.mulf %91, %95 : vector<8x8xf32>
    %97 = arith.truncf %96 : vector<8x8xf32> to vector<8x8xbf16>
    %cst_47 = arith.constant dense<0.000000e+00> : vector<8x8xf32>
    %98 = tpu.matmul %97, %85, %cst_47 {dimension_numbers = #tpu.dot_dimension_numbers<[1], [0], [0], [1], [0, 0, 1, 1], [], []>} : vector<8x8xbf16>, vector<8x8xbf16>, vector<8x8xf32> -> vector<8x8xf32>
    %99 = tpu.concatenate %82, %98 in 1 : vector<8x8xf32>, vector<8x8xf32> -> vector<8x16xf32>
    %100 = arith.truncf %99 : vector<8x16xf32> to vector<8x16xbf16>
    %c0_48 = arith.constant 0 : index
    %c16_49 = arith.constant 16 : index
    %101 = vector.load %arg10[%c0_48, %c16_49] : memref<8x32xbf16, #tpu.memory_space<vmem>>, vector<8x16xbf16>
    tpu.vector_store %arg10[%c0_48, %c16_49], %100 {strides = array<i32>} : memref<8x32xbf16, #tpu.memory_space<vmem>>, vector<8x16xbf16>,
    %c0_50 = arith.constant 0 : index
    %c0_51 = arith.constant 0 : index
    %102 = vector.load %arg10[%c0_50, %c0_51] : memref<8x32xbf16, #tpu.memory_space<vmem>>, vector<8x32xbf16>
    %c0_52 = arith.constant 0 : index
    %c0_53 = arith.constant 0 : index
    %103 = vector.load %arg6[%c0_52, %c0_53] : memref<32x32xbf16, #tpu.memory_space<vmem>>, vector<32x32xbf16>
    %cst_54 = arith.constant dense<0.000000e+00> : vector<8x32xf32>
    %104 = tpu.matmul %102, %103, %cst_54 {dimension_numbers = #tpu.dot_dimension_numbers<[1], [0], [0], [1], [0, 0, 1, 1], [], []>} : vector<8x32xbf16>, vector<32x32xbf16>, vector<8x32xf32> -> vector<8x32xf32>
    %c0_55 = arith.constant 0 : index
    %c0_56 = arith.constant 0 : index
    %105 = vector.load %arg7[%c0_55, %c0_56] : memref<1x32xf32, #tpu.memory_space<vmem>>, vector<1x32xf32>
    %106 = vector.broadcast %105 : vector<1x32xf32> to vector<8x32xf32>
    %107 = arith.addf %104, %106 : vector<8x32xf32>
    %108 = arith.addf %1, %107 : vector<8x32xf32>
    %c0_57 = arith.constant 0 : index
    %c0_58 = arith.constant 0 : index
    %c0_59 = arith.constant 0 : index
    %109 = vector.load %arg8[%c0_57, %c0_58, %c0_59] : memref<1x8x32xf32, #tpu.memory_space<vmem>>, vector<1x8x32xf32>
    %110 = vector.shape_cast %109 : vector<1x8x32xf32> to vector<8x32xf32>
    %111 = vector.shape_cast %108 : vector<8x32xf32> to vector<1x8x32xf32>
    tpu.vector_store %arg8[%c0_57, %c0_58, %c0_59], %111 {strides = array<i32>} : memref<1x8x32xf32, #tpu.memory_space<vmem>>, vector<1x8x32xf32>,
    return
  }
  func.func @transform_0(%arg0: i32) -> (i32, i32, i32) {
    %c0_i32 = arith.constant 0 : i32
    %c0_i32_0 = arith.constant 0 : i32
    %c0_i32_1 = arith.constant 0 : i32
    return %arg0, %c0_i32, %c0_i32_0 : i32, i32, i32
  }
  func.func @transform_1(%arg0: i32) -> (i32, i32) {
    %c0_i32 = arith.constant 0 : i32
    %c0_i32_0 = arith.constant 0 : i32
    %c0_i32_1 = arith.constant 0 : i32
    return %c0_i32, %c0_i32_0 : i32, i32
  }
  func.func @transform_2(%arg0: i32) -> (i32, i32) {
    %c0_i32 = arith.constant 0 : i32
    %c0_i32_0 = arith.constant 0 : i32
    %c0_i32_1 = arith.constant 0 : i32
    return %c0_i32, %c0_i32_0 : i32, i32
  }
  func.func @transform_3(%arg0: i32) -> (i32, i32) {
    %c0_i32 = arith.constant 0 : i32
    %c0_i32_0 = arith.constant 0 : i32
    %c0_i32_1 = arith.constant 0 : i32
    return %c0_i32, %c0_i32_0 : i32, i32
  }
  func.func @transform_4(%arg0: i32) -> (i32, i32) {
    %c0_i32 = arith.constant 0 : i32
    %c0_i32_0 = arith.constant 0 : i32
    %c0_i32_1 = arith.constant 0 : i32
    return %c0_i32, %c0_i32_0 : i32, i32
  }
  func.func @transform_5(%arg0: i32) -> (i32, i32) {
    %c0_i32 = arith.constant 0 : i32
    %c0_i32_0 = arith.constant 0 : i32
    %c0_i32_1 = arith.constant 0 : i32
    return %c0_i32, %c0_i32_0 : i32, i32
  }
  func.func @transform_6(%arg0: i32) -> (i32, i32) {
    %c0_i32 = arith.constant 0 : i32
    %c0_i32_0 = arith.constant 0 : i32
    %c0_i32_1 = arith.constant 0 : i32
    return %c0_i32, %c0_i32_0 : i32, i32
  }
  func.func @transform_7(%arg0: i32) -> (i32, i32, i32) {
    %c0_i32 = arith.constant 0 : i32
    %c0_i32_0 = arith.constant 0 : i32
    %c0_i32_1 = arith.constant 0 : i32
    return %arg0, %c0_i32, %c0_i32_0 : i32, i32, i32
  }
}

</mosaic_0001>

<llo_original>
// kernel: tpu_custom_call.1
$region0: #{tpu_custom_call.1}
  #allocation0 [shape = 'u32[]', space=smem, size = 0x4, offset = 0x4, fixed_abs, tag = 'smem constant byte address 0x4 - core index']
  #allocation1 [shape = 'u32[144,128]{1,0:T(1,128)}', space=vmem, size = 0x12000, scoped, tag = 'internal scratch']
  #allocation2 [shape = 'bf16[8,96]{1,0:T(8,128)(2,1)}', space=vmem, size = 0x800, scoped, tag = 'scratch operand']
  #allocation3 [shape = 'bf16[8,32]{1,0:T(8,128)(2,1)}', space=vmem, size = 0x800, scoped, tag = 'scratch operand']
  %s0 = inlined_call_operand.hbm [shape: f32[2,8,32], index: 0, kind: input, shape index: {}]
  %s1 = inlined_call_operand.vmem [shape: f32[1,32], index: 1, kind: input, shape index: {}]
  %s2 = inlined_call_operand.vmem [shape: f32[1,32], index: 2, kind: input, shape index: {}]
  %s3 = inlined_call_operand.hbm [shape: bf16[32,96], index: 3, kind: input, shape index: {}]
  %s4 = inlined_call_operand.hbm [shape: f32[1,96], index: 4, kind: input, shape index: {}]
  %s5 = inlined_call_operand.vmem [shape: bf16[32,32], index: 5, kind: input, shape index: {}]
  %s6 = inlined_call_operand.vmem [shape: f32[1,32], index: 6, kind: input, shape index: {}]
  %s7 = inlined_call_operand.hbm [shape: f32[2,8,32], index: 7, kind: output, shape index: {}]
  %s8 = sld [smem:[#allocation0]]
  $region73: #{tpu_custom_call.1} parent=0
    _
  %s10 = ssub.s32 1, %s8
  %s11 = scalar_select 0, %s10, %s8
  $region1: #{tpu_custom_call.1} parent=0
    #allocation4 [shape = 'u8[8192]{0}', space=vmem, size = 0x2000, scoped, tag = 'input window, operand 0']
    #allocation5 [shape = 's32[2]{0}', space=sflag, size = 0x8, scoped, tag = 'scoped memory for tpu_custom_call.1']
    #allocation6 [shape = 's32[2]{0}', space=sflag, size = 0x8, scoped, tag = 'scoped memory for tpu_custom_call.1']
    #allocation7 [shape = 'u8[8192]{0}', space=vmem, size = 0x2000, scoped, tag = 'input window, operand 3, single buffered']
    #allocation8 [shape = 's32[1]{0}', space=sflag, size = 0x4, scoped, tag = 'scoped memory for tpu_custom_call.1']
    #allocation9 [shape = 'u8[512]{0}', space=vmem, size = 0x400, scoped, tag = 'input window, operand 4, single buffered']
    #allocation10 [shape = 'u8[8192]{0}', space=vmem, size = 0x2000, scoped, tag = 'output window, operand 0']
    %12 = vsyncpa [#allocation5], 0
    %s13 = scalar_lea.sflag [#allocation5], 1
    %14 = vsyncpa %s13, 0
    %15 = vsyncpa [#allocation8], 0
    %16 = vsyncpa [#allocation6], 0
    %s17 = scalar_lea.sflag [#allocation6], 1
    %18 = vsyncpa %s17, 0
    loop: start=0, step=1, limit=4
    $region2: #{tpu_custom_call.1} parent=1 // loop_pre_header
      _
    $region3: #{tpu_custom_call.1} parent=1 // loop_header
      %s20 = sphi 0, %s24
      %p21 = scmp.ge.s32.totalorder %s20, 4
      %s30 = sphi 0, %s32
      %s33 = sphi 0, %s30
      %s34 = sphi 0, %s33
      %s50 = sphi 0, %s34
      %s54 = sphi 0, %s54
      %s56 = sphi 0, %s54
      %s57 = sphi 0, %s56
      %s71 = sphi 0, %s57
      %s75 = sphi 0, %s75
      %s77 = sphi 0, %s75
      %s78 = sphi 0, %s77
      %s92 = sphi 0, %s78
      %s96 = sphi 0, %s96
      %s98 = sphi 0, %s96
      %s99 = sphi 0, %s98
      %s113 = sphi 0, %s99
      %s117 = sphi 0, %s117
      %s119 = sphi 0, %s117
      %s120 = sphi 0, %s119
      %s134 = sphi 0, %s120
      %s138 = sphi 0, %s138
      %s140 = sphi 0, %s138
      %s141 = sphi 0, %s140
      %s155 = sphi 0, %s141
      %s159 = sphi 0, %s159
      %s161 = sphi 0, %s159
      %s162 = sphi 0, %s161
      %s176 = sphi 0, %s162
      %s182 = sphi 0, %s184
      %s185 = sphi 0, %s182
      %s186 = sphi 0, %s185
      %s202 = sphi 0, %s186
    $region4: #{tpu_custom_call.1} parent=1 // loop_header_branch
      %23 = sbr.rel (%p21) target = $region8
    $region5: #{tpu_custom_call.1} parent=1 // loop_body
      %s25 = ssub.s32 %s20, 1
      %s26 = ssub.s32 %s20, 2
      %s27 = sadd.s32 %s20, 1
      %s28 = ssub.s32 %s20, %s27
      %p29 = scmp.eq.s32.totalorder %s28, 0
      %s31 = sadd.s32 %s30, 1
      %s32 = scalar_select %p29, %s30, %s31
      %p35 = pneg %p29
      %p36 = scmp.eq.s32.totalorder %s20, 1
      %p37 = por %p35, %p36
      %p38 = scmp.ne.s32.totalorder %s30, %s33
      %p39 = scmp.eq.s32.totalorder %s20, 0
      %p40 = por %p38, %p39
      %p41 = scmp.ne.s32.totalorder %s30, %s33
      %p42 = scmp.eq.s32.totalorder %s25, 1
      %p43 = por %p41, %p42
      %p44 = scmp.ne.s32.totalorder %s33, %s34
      %p45 = scmp.eq.s32.totalorder %s25, 0
      %p46 = por %p44, %p45
      %p47 = scmp.ne.s32.totalorder %s33, %s34
      %p48 = scmp.eq.s32.totalorder %s26, 1
      %p49 = por %p47, %p48
      %p51 = scmp.ne.s32.totalorder %s34, %s50
      %p52 = scmp.eq.s32.totalorder %s26, 0
      %p53 = por %p51, %p52
      %s55 = sadd.s32 %s54, 1
      %p58 = scmp.eq.s32.totalorder %s20, 1
      %p59 = scmp.ne.s32.totalorder %s54, %s56
      %p60 = scmp.eq.s32.totalorder %s20, 0
      %p61 = por %p59, %p60
      %p62 = scmp.ne.s32.totalorder %s54, %s56
      %p63 = scmp.eq.s32.totalorder %s25, 1
      %p64 = por %p62, %p63
      %p65 = scmp.ne.s32.totalorder %s56, %s57
      %p66 = scmp.eq.s32.totalorder %s25, 0
      %p67 = por %p65, %p66
      %p68 = scmp.ne.s32.totalorder %s56, %s57
      %p69 = scmp.eq.s32.totalorder %s26, 1
      %p70 = por %p68, %p69
      %p72 = scmp.ne.s32.totalorder %s57, %s71
      %p73 = scmp.eq.s32.totalorder %s26, 0
      %p74 = por %p72, %p73
      %s76 = sadd.s32 %s75, 1
      %p79 = scmp.eq.s32.totalorder %s20, 1
      %p80 = scmp.ne.s32.totalorder %s75, %s77
      %p81 = scmp.eq.s32.totalorder %s20, 0
      %p82 = por %p80, %p81
      %p83 = scmp.ne.s32.totalorder %s75, %s77
      %p84 = scmp.eq.s32.totalorder %s25, 1
      %p85 = por %p83, %p84
      %p86 = scmp.ne.s32.totalorder %s77, %s78
      %p87 = scmp.eq.s32.totalorder %s25, 0
      %p88 = por %p86, %p87
      %p89 = scmp.ne.s32.totalorder %s77, %s78
      %p90 = scmp.eq.s32.totalorder %s26, 1
      %p91 = por %p89, %p90
      %p93 = scmp.ne.s32.totalorder %s78, %s92
      %p94 = scmp.eq.s32.totalorder %s26, 0
      %p95 = por %p93, %p94
      %s97 = sadd.s32 %s96, 1
      %p100 = scmp.eq.s32.totalorder %s20, 1
      %p101 = scmp.ne.s32.totalorder %s96, %s98
      %p102 = scmp.eq.s32.totalorder %s20, 0
      %p103 = por %p101, %p102
      %p104 = scmp.ne.s32.totalorder %s96, %s98
      %p105 = scmp.eq.s32.totalorder %s25, 1
      %p106 = por %p104, %p105
      %p107 = scmp.ne.s32.totalorder %s98, %s99
      %p108 = scmp.eq.s32.totalorder %s25, 0
      %p109 = por %p107, %p108
      %p110 = scmp.ne.s32.totalorder %s98, %s99
      %p111 = scmp.eq.s32.totalorder %s26, 1
      %p112 = por %p110, %p111
      %p114 = scmp.ne.s32.totalorder %s99, %s113
      %p115 = scmp.eq.s32.totalorder %s26, 0
      %p116 = por %p114, %p115
      %s118 = sadd.s32 %s117, 1
      %p121 = scmp.eq.s32.totalorder %s20, 1
      %p122 = scmp.ne.s32.totalorder %s117, %s119
      %p123 = scmp.eq.s32.totalorder %s20, 0
      %p124 = por %p122, %p123
      %p125 = scmp.ne.s32.totalorder %s117, %s119
      %p126 = scmp.eq.s32.totalorder %s25, 1
      %p127 = por %p125, %p126
      %p128 = scmp.ne.s32.totalorder %s119, %s120
      %p129 = scmp.eq.s32.totalorder %s25, 0
      %p130 = por %p128, %p129
      %p131 = scmp.ne.s32.totalorder %s119, %s120
      %p132 = scmp.eq.s32.totalorder %s26, 1
      %p133 = por %p131, %p132
      %p135 = scmp.ne.s32.totalorder %s120, %s134
      %p136 = scmp.eq.s32.totalorder %s26, 0
      %p137 = por %p135, %p136
      %s139 = sadd.s32 %s138, 1
      %p142 = scmp.eq.s32.totalorder %s20, 1
      %p143 = scmp.ne.s32.totalorder %s138, %s140
      %p144 = scmp.eq.s32.totalorder %s20, 0
      %p145 = por %p143, %p144
      %p146 = scmp.ne.s32.totalorder %s138, %s140
      %p147 = scmp.eq.s32.totalorder %s25, 1
      %p148 = por %p146, %p147
      %p149 = scmp.ne.s32.totalorder %s140, %s141
      %p150 = scmp.eq.s32.totalorder %s25, 0
      %p151 = por %p149, %p150
      %p152 = scmp.ne.s32.totalorder %s140, %s141
      %p153 = scmp.eq.s32.totalorder %s26, 1
      %p154 = por %p152, %p153
      %p156 = scmp.ne.s32.totalorder %s141, %s155
      %p157 = scmp.eq.s32.totalorder %s26, 0
      %p158 = por %p156, %p157
      %s160 = sadd.s32 %s159, 1
      %p163 = scmp.eq.s32.totalorder %s20, 1
      %p164 = scmp.ne.s32.totalorder %s159, %s161
      %p165 = scmp.eq.s32.totalorder %s20, 0
      %p166 = por %p164, %p165
      %p167 = scmp.ne.s32.totalorder %s159, %s161
      %p168 = scmp.eq.s32.totalorder %s25, 1
      %p169 = por %p167, %p168
      %p170 = scmp.ne.s32.totalorder %s161, %s162
      %p171 = scmp.eq.s32.totalorder %s25, 0
      %p172 = por %p170, %p171
      %p173 = scmp.ne.s32.totalorder %s161, %s162
      %p174 = scmp.eq.s32.totalorder %s26, 1
      %p175 = por %p173, %p174
      %p177 = scmp.ne.s32.totalorder %s162, %s176
      %p178 = scmp.eq.s32.totalorder %s26, 0
      %p179 = por %p177, %p178
      %s180 = ssub.s32 %s20, %s27
      %p181 = scmp.eq.s32.totalorder %s180, 0
      %s183 = sadd.s32 %s182, 1
      %s184 = scalar_select %p181, %s182, %s183
      %p187 = pneg %p181
      %p188 = scmp.eq.s32.totalorder %s20, 1
      %p189 = por %p187, %p188
      %p190 = scmp.ne.s32.totalorder %s182, %s185
      %p191 = scmp.eq.s32.totalorder %s20, 0
      %p192 = por %p190, %p191
      %p193 = scmp.ne.s32.totalorder %s182, %s185
      %p194 = scmp.eq.s32.totalorder %s25, 1
      %p195 = por %p193, %p194
      %p196 = scmp.ne.s32.totalorder %s185, %s186
      %p197 = scmp.eq.s32.totalorder %s25, 0
      %p198 = por %p196, %p197
      %p199 = scmp.ne.s32.totalorder %s185, %s186
      %p200 = scmp.eq.s32.totalorder %s26, 1
      %p201 = por %p199, %p200
      %p203 = scmp.ne.s32.totalorder %s186, %s202
      %p204 = scmp.eq.s32.totalorder %s26, 0
      %p205 = por %p203, %p204
      %p206 = scmp.le.s32.totalorder 1, %s20
      %p207 = scmp.lt.s32.totalorder %s20, 3
      %p208 = pnand %p206, %p207
      %p209 = pneg %p208
      // Predicated region
      $region9: #{tpu_custom_call.1} parent=5 // pred_check
        _
      $region10: #{tpu_custom_call.1} parent=5 // pred_check_branch
        %211 = sbr.rel (%p208) target = $region12
      $region11: #{tpu_custom_call.1} parent=5 // pred_region
        %s212 = ssub.s32 %s20, 1
        // Predicated region
        $region13: #{tpu_custom_call.1} parent=11 // pred_check
          %p213 = pneg %p67
        $region14: #{tpu_custom_call.1} parent=11 // pred_check_branch
          %215 = sbr.rel (%p213) target = $region16
        $region15: #{tpu_custom_call.1} parent=11 // pred_region
          _
        $region16: #{tpu_custom_call.1} parent=11 // pred_fallthru
          _
        // Predicated region
        $region17: #{tpu_custom_call.1} parent=11 // pred_check
          %p216 = pneg %p88
        $region18: #{tpu_custom_call.1} parent=11 // pred_check_branch
          %218 = sbr.rel (%p216) target = $region20
        $region19: #{tpu_custom_call.1} parent=11 // pred_region
          _
        $region20: #{tpu_custom_call.1} parent=11 // pred_fallthru
          _
        // Predicated region
        $region21: #{tpu_custom_call.1} parent=11 // pred_check
          %p219 = pneg %p109
        $region22: #{tpu_custom_call.1} parent=11 // pred_check_branch
          %221 = sbr.rel (%p219) target = $region24
        $region23: #{tpu_custom_call.1} parent=11 // pred_region
          %s223 = ssub.s32 256, 256
          %224 = vsyncadd [#allocation8], %s223
          %s225 = sshll.u32 [#allocation7], 4
          %s226 = int_to_ptr.vmem [resolvable:$true] %s225
          %231 = dma.hbm_to_vmem [thread:$0]  %s3, 256, %s226, [#allocation8], 64, 64, 4
        $region24: #{tpu_custom_call.1} parent=11 // pred_fallthru
          _
        // Predicated region
        $region25: #{tpu_custom_call.1} parent=11 // pred_check
          %p232 = pneg %p130
        $region26: #{tpu_custom_call.1} parent=11 // pred_check_branch
          %234 = sbr.rel (%p232) target = $region28
        $region27: #{tpu_custom_call.1} parent=11 // pred_region
          %s236 = ssub.s32 16, 16
          %237 = vsyncadd [#allocation8], %s236
          %s239 = sshll.u32 [#allocation9], 4
          %s240 = int_to_ptr.vmem [resolvable:$true] %s239
          %242 = dma.hbm_to_vmem [thread:$0]  %s4, 16, %s240, [#allocation8]
        $region28: #{tpu_custom_call.1} parent=11 // pred_fallthru
          _
        // Predicated region
        $region29: #{tpu_custom_call.1} parent=11 // pred_check
          %p243 = pneg %p151
        $region30: #{tpu_custom_call.1} parent=11 // pred_check_branch
          %245 = sbr.rel (%p243) target = $region32
        $region31: #{tpu_custom_call.1} parent=11 // pred_region
          _
        $region32: #{tpu_custom_call.1} parent=11 // pred_fallthru
          _
        // Predicated region
        $region33: #{tpu_custom_call.1} parent=11 // pred_check
          %p246 = pneg %p172
        $region34: #{tpu_custom_call.1} parent=11 // pred_check_branch
          %248 = sbr.rel (%p246) target = $region36
        $region35: #{tpu_custom_call.1} parent=11 // pred_region
          _
        $region36: #{tpu_custom_call.1} parent=11 // pred_fallthru
          _
      $region12: #{tpu_custom_call.1} parent=5 // pred_fallthru
        _
      %p249 = scmp.lt.s32.totalorder %s20, 2
      // Predicated region
      $region37: #{tpu_custom_call.1} parent=5 // pred_check
        %p250 = pneg %p249
      $region38: #{tpu_custom_call.1} parent=5 // pred_check_branch
        %252 = sbr.rel (%p250) target = $region40
      $region39: #{tpu_custom_call.1} parent=5 // pred_region
        // Predicated region
        $region41: #{tpu_custom_call.1} parent=39 // pred_check
          %p253 = pneg %p40
        $region42: #{tpu_custom_call.1} parent=39 // pred_check_branch
          %255 = sbr.rel (%p253) target = $region44
        $region43: #{tpu_custom_call.1} parent=39 // pred_region
          %s256 = sand.u32 %s30, 1
          %s257 = scalar_lea.sflag [#allocation5], %s256
          %s258 = sand.u32 %s30, 1
          %s259 = smul.addr %s258, 8
          %s260 = scalar_lea.vmem [#allocation4], %s259
          %s262 = ssub.s32 128, 128
          %263 = vsyncadd %s257, %s262
          %s264 = smul.addr %s20, 128
          %s265 = scalar_lea.hbm %s0, %s264
          %s267 = sshll.u32 %s260, 4
          %s268 = int_to_ptr.vmem [resolvable:$true] %s267
          %270 = dma.hbm_to_vmem [thread:$0]  %s265, 128, %s268, %s257
        $region44: #{tpu_custom_call.1} parent=39 // pred_fallthru
          _
      $region40: #{tpu_custom_call.1} parent=5 // pred_fallthru
        _
      %p271 = scmp.le.s32.totalorder 1, %s20
      %p272 = scmp.lt.s32.totalorder %s20, 3
      %p273 = pnand %p271, %p272
      %p274 = pneg %p273
      // Predicated region
      $region45: #{tpu_custom_call.1} parent=5 // pred_check
        _
      $region46: #{tpu_custom_call.1} parent=5 // pred_check_branch
        %276 = sbr.rel (%p273) target = $region48
      $region47: #{tpu_custom_call.1} parent=5 // pred_region
        %s277 = ssub.s32 %s20, 1
        %s278 = sand.u32 %s33, 1
        %s279 = scalar_lea.sflag [#allocation5], %s278
        %s280 = sand.u32 %s33, 1
        %s281 = smul.addr %s280, 8
        %s282 = scalar_lea.vmem [#allocation4], %s281
        // Predicated region
        $region49: #{tpu_custom_call.1} parent=47 // pred_check
          %p283 = pneg %p46
        $region50: #{tpu_custom_call.1} parent=47 // pred_check_branch
          %285 = sbr.rel (%p283) target = $region52
        $region51: #{tpu_custom_call.1} parent=47 // pred_region
          %286 = dma.done %s279, 128
        $region52: #{tpu_custom_call.1} parent=47 // pred_fallthru
          _
        // Predicated region
        $region53: #{tpu_custom_call.1} parent=47 // pred_check
          %p287 = pneg %p109
        $region54: #{tpu_custom_call.1} parent=47 // pred_check_branch
          %289 = sbr.rel (%p287) target = $region56
        $region55: #{tpu_custom_call.1} parent=47 // pred_region
          %290 = dma.done [#allocation8], 256
        $region56: #{tpu_custom_call.1} parent=47 // pred_fallthru
          _
        // Predicated region
        $region57: #{tpu_custom_call.1} parent=47 // pred_check
          %p291 = pneg %p130
        $region58: #{tpu_custom_call.1} parent=47 // pred_check_branch
          %293 = sbr.rel (%p291) target = $region60
        $region59: #{tpu_custom_call.1} parent=47 // pred_region
          %294 = dma.done [#allocation8], 16
        $region60: #{tpu_custom_call.1} parent=47 // pred_fallthru
          _
        %s295 = sand.u32 %s33, 1
        %s296 = scalar_lea.sflag [#allocation5], %s295
        %s297 = sand.u32 %s33, 1
        %s298 = smul.addr %s297, 8
        %s299 = scalar_lea.vmem [#allocation4], %s298
        %p300 = pneg %p46
        %p301 = pneg %p43
        %p302 = pneg %p67
        %p303 = pneg %p64
        %p304 = pneg %p88
        %p305 = pneg %p85
        %p306 = pneg %p109
        %p307 = pneg %p106
        %p308 = pneg %p130
        %p309 = pneg %p127
        %p310 = pneg %p151
        %p311 = pneg %p148
        %p312 = pneg %p172
        %p313 = pneg %p169
        %p314 = pneg %p198
        %p315 = pneg %p195
        %s316 = sand.u32 %s185, 1
        %s317 = scalar_lea.sflag [#allocation6], %s316
        %s318 = sand.u32 %s185, 1
        %s319 = smul.addr %s318, 8
        %s320 = scalar_lea.vmem [#allocation10], %s319
        %v322 = vld [vmem:[%s282] sm:$0xff]
        %v323 = vld [vmem:[%s1] sm:$0x1]
        %v324 = vld [vmem:[%s2] sm:$0x1]
        %vm325 = vcmask 261120
        %v326 = vsel %vm325, %v322, 0.0
        %327 = vadd.xlane.f32.xlu0 %v326
        %v328 = vpop.xlane.xlu0 %327
        %v329 = vrcp.pop 32.0
        %v330 = vmul.f32 %v328, %v329
        %v331 = vsub.f32 %v322, %v330
        %v332 = vmul.f32 %v331, %v331
        %v333 = vsel %vm325, %v332, 0.0
        %334 = vadd.xlane.f32.xlu0 %v333
        %v335 = vpop.xlane.xlu0 %334
        %v336 = vmul.f32 %v335, %v329
        %v337 = vadd.f32 %v336, 1e-05
        %v338 = vrsqrt.pop %v337
        %v339 = vmul.f32 %v331, %v338
        %v341 = vlaneseq
        %v342 = vshrl.u32 %v341, 7
        %v343 = vsub.s32 0, %v342
        %v344 = vrot.slane %v323, %v343
        %v346 = vmul.f32 %v339, %v344
        %v348 = vlaneseq
        %v349 = vshrl.u32 %v348, 7
        %v350 = vsub.s32 0, %v349
        %v351 = vrot.slane %v324, %v350
        %v353 = vadd.f32 %v346, %v351
        %v354 = vpack.c.bf16 %v353, %v353
        %v355 = vld [vmem:[#allocation7] sm:$0xf]
        %v356 = vld [vmem:[#allocation7 + $0x4] sm:$0xf]
        %v357 = vld [vmem:[#allocation7 + $0x8] sm:$0xf]
        %v358 = vld [vmem:[#allocation7 + $0xc] sm:$0xf]
        %v359 = vld [vmem:[#allocation9] sm:$0x1]
        %v361 = vlaneseq
        %v362 = vshrl.u32 %v361, 7
        %v363 = vsub.s32 0, %v362
        %v364 = vrot.slane %v359, %v363
        %v370 = vunpack.c.l.b16 %v355
        %v371 = vunpack.c.l.b16 %v356
        %v372 = vunpack.c.l.b16 %v357
        %v373 = vunpack.c.l.b16 %v358
        %v374 = vpack.c.b16 %v371, %v370
        %v375 = vpack.c.b16 %v373, %v372
        %v379 = vsel %vm325, %v354, 0
        %381 = vmatprep.subr.bf16.mxu0 0
        %382 = vmatpush1.bf16.msra.mxu0 %v374
        %383 = vmatprep.subr.bf16.mxu0 0
        %384 = vmatpush1.bf16.msra.mxu0 %v375
        %385 = vmatprep.subr.bf16.mxu0 0
        %386 = vmatpush1.bf16.msra.mxu0 0
        %387 = vmatprep.subr.bf16.mxu0 0
        %388 = vmatpush1.bf16.msra.mxu0 0
        %389 = vmatprep.subr.bf16.mxu0 0
        %390 = vmatpush1.bf16.msra.mxu0 0
        %391 = vmatprep.subr.bf16.mxu0 0
        %392 = vmatpush1.bf16.msra.mxu0 0
        %393 = vmatprep.subr.bf16.mxu0 0
        %394 = vmatpush1.bf16.msra.mxu0 0
        %395 = vmatprep.subr.bf16.mxu0 0
        %396 = vmatpush1.bf16.msra.mxu0 0
        %397 = vmatprep.subr.bf16.mxu0 0
        %398 = vmatpush1.bf16.msra.mxu0 0
        %399 = vmatprep.subr.bf16.mxu0 0
        %400 = vmatpush1.bf16.msra.mxu0 0
        %401 = vmatprep.subr.bf16.mxu0 0
        %402 = vmatpush1.bf16.msra.mxu0 0
        %403 = vmatprep.subr.bf16.mxu0 0
        %404 = vmatpush1.bf16.msra.mxu0 0
        %405 = vmatprep.subr.bf16.mxu0 0
        %406 = vmatpush1.bf16.msra.mxu0 0
        %407 = vmatprep.subr.bf16.mxu0 0
        %408 = vmatpush1.bf16.msra.mxu0 0
        %409 = vmatprep.subr.bf16.mxu0 0
        %410 = vmatpush1.bf16.msra.mxu0 0
        %411 = vmatprep.subr.bf16.mxu0 0
        %412 = vmatpush1.bf16.msra.mxu0 0
        %413 = vmatprep.mubr.bf16.mxu0 0
        %414 = vmatmul.mubr.bf16.gmra.mrb[0].mxu0 %v379
        %v415 = vpop.f32.mrb[0].mxu0
        %v416 = vadd.f32 %v364, %v415
        %v417 = vpop.f32.mrb[0].mxu0
        %v418 = vpop.f32.mrb[0].mxu0
        %v419 = vpop.f32.mrb[0].mxu0
        %420 = vdwg.mxu0
        %v421 = vpack.c.bf16 %v416, %v416
        %vm422 = vcmask 781312
        %423 = vst.msk [vmem:[#allocation2] sm:$0xf] %vm422, %v421
        %v424 = vld [vmem:[#allocation2] sm:$0xf]
        %v426 = vunpack.c.l.b16 %v424
        %v427 = vpack.c.b16 %v426, %v426
        %428 = vrot.lane.b32.xlu0 %v427, 96
        %v429 = vpop.permute.xlu0 %428
        %vm430 = vcmask 64512
        %v432 = vsel %vm430, %v424, 0
        %v435 = vsel %vm430, %v429, 0
        %437 = vmatprep.subr.bf16.mxu0 0
        %438 = vmatpush1.bf16.xpose.msra.mxu0 %v435
        %439 = vmatprep.subr.bf16.mxu0 0
        %440 = vmatpush1.bf16.xpose.msra.mxu0 0
        %441 = vmatprep.subr.bf16.mxu0 0
        %442 = vmatpush1.bf16.xpose.msra.mxu0 0
        %443 = vmatprep.subr.bf16.mxu0 0
        %444 = vmatpush1.bf16.xpose.msra.mxu0 0
        %445 = vmatprep.subr.bf16.mxu0 0
        %446 = vmatpush1.bf16.xpose.msra.mxu0 0
        %447 = vmatprep.subr.bf16.mxu0 0
        %448 = vmatpush1.bf16.xpose.msra.mxu0 0
        %449 = vmatprep.subr.bf16.mxu0 0
        %450 = vmatpush1.bf16.xpose.msra.mxu0 0
        %451 = vmatprep.subr.bf16.mxu0 0
        %452 = vmatpush1.bf16.xpose.msra.mxu0 0
        %453 = vmatprep.subr.bf16.mxu0 0
        %454 = vmatpush1.bf16.xpose.msra.mxu0 0
        %455 = vmatprep.subr.bf16.mxu0 0
        %456 = vmatpush1.bf16.xpose.msra.mxu0 0
        %457 = vmatprep.subr.bf16.mxu0 0
        %458 = vmatpush1.bf16.xpose.msra.mxu0 0
        %459 = vmatprep.subr.bf16.mxu0 0
        %460 = vmatpush1.bf16.xpose.msra.mxu0 0
        %461 = vmatprep.subr.bf16.mxu0 0
        %462 = vmatpush1.bf16.xpose.msra.mxu0 0
        %463 = vmatprep.subr.bf16.mxu0 0
        %464 = vmatpush1.bf16.xpose.msra.mxu0 0
        %465 = vmatprep.subr.bf16.mxu0 0
        %466 = vmatpush1.bf16.xpose.msra.mxu0 0
        %467 = vmatprep.subr.bf16.mxu0 0
        %468 = vmatpush1.bf16.xpose.msra.mxu0 0
        %469 = vmatprep.mubr.bf16.mxu0 0
        %470 = vmatmul.mubr.bf16.gmra.mrb[0].mxu0 %v432
        %v471 = vpop.f32.mrb[0].mxu0
        %v472 = vadd.f32 0.0, %v471
        %v473 = vpop.f32.mrb[0].mxu0
        %v474 = vpop.f32.mrb[0].mxu0
        %v475 = vpop.f32.mrb[0].mxu0
        %476 = vdwg.mxu0
        %v477 = vsel %vm430, %v472, -inf
        %478 = vmax.xlane.f32.xlu0 %v477
        %v479 = vpop.xlane.xlu0 %478
        %v480 = vsub.f32 %v472, %v479
        %v481 = vmul.f32 %v480, 1.442695
        %v482 = vpow.pop %v481
        %v483 = vsel %vm430, %v482, 0.0
        %484 = vadd.xlane.f32.xlu0 %v483
        %v485 = vpop.xlane.xlu0 %484
        %v486 = vrcp.pop %v485
        %v487 = vmul.f32 %v482, %v486
        %v488 = vpack.c.bf16 %v487, %v487
        %489 = vrot.lane.b32.xlu0 %v427, 64
        %v490 = vpop.permute.xlu0 %489
        %v492 = vsel %vm430, %v488, 0
        %vm494 = vcmask 1043456
        %v496 = vsel %vm494, %v490, 0
        %498 = vmatprep.subr.bf16.mxu0 0
        %499 = vmatpush1.bf16.msra.mxu0 %v496
        %500 = vmatprep.subr.bf16.mxu0 0
        %501 = vmatpush1.bf16.msra.mxu0 0
        %502 = vmatprep.subr.bf16.mxu0 0
        %503 = vmatpush1.bf16.msra.mxu0 0
        %504 = vmatprep.subr.bf16.mxu0 0
        %505 = vmatpush1.bf16.msra.mxu0 0
        %506 = vmatprep.subr.bf16.mxu0 0
        %507 = vmatpush1.bf16.msra.mxu0 0
        %508 = vmatprep.subr.bf16.mxu0 0
        %509 = vmatpush1.bf16.msra.mxu0 0
        %510 = vmatprep.subr.bf16.mxu0 0
        %511 = vmatpush1.bf16.msra.mxu0 0
        %512 = vmatprep.subr.bf16.mxu0 0
        %513 = vmatpush1.bf16.msra.mxu0 0
        %514 = vmatprep.subr.bf16.mxu0 0
        %515 = vmatpush1.bf16.msra.mxu0 0
        %516 = vmatprep.subr.bf16.mxu0 0
        %517 = vmatpush1.bf16.msra.mxu0 0
        %518 = vmatprep.subr.bf16.mxu0 0
        %519 = vmatpush1.bf16.msra.mxu0 0
        %520 = vmatprep.subr.bf16.mxu0 0
        %521 = vmatpush1.bf16.msra.mxu0 0
        %522 = vmatprep.subr.bf16.mxu0 0
        %523 = vmatpush1.bf16.msra.mxu0 0
        %524 = vmatprep.subr.bf16.mxu0 0
        %525 = vmatpush1.bf16.msra.mxu0 0
        %526 = vmatprep.subr.bf16.mxu0 0
        %527 = vmatpush1.bf16.msra.mxu0 0
        %528 = vmatprep.subr.bf16.mxu0 0
        %529 = vmatpush1.bf16.msra.mxu0 0
        %530 = vmatprep.mubr.bf16.mxu0 0
        %531 = vmatmul.mubr.bf16.gmra.mrb[0].mxu0 %v492
        %v532 = vpop.f32.mrb[0].mxu0
        %v533 = vadd.f32 0.0, %v532
        %v534 = vpop.f32.mrb[0].mxu0
        %v535 = vpop.f32.mrb[0].mxu0
        %v536 = vpop.f32.mrb[0].mxu0
        %537 = vdwg.mxu0
        %538 = vrot.lane.b32.xlu0 %v427, 120
        %v539 = vpop.permute.xlu0 %538
        %540 = vrot.lane.b32.xlu0 %v427, 88
        %v541 = vpop.permute.xlu0 %540
        %v543 = vsel %vm430, %v539, 0
        %v546 = vsel %vm430, %v541, 0
        %548 = vmatprep.subr.bf16.mxu0 0
        %549 = vmatpush1.bf16.xpose.msra.mxu0 %v546
        %550 = vmatprep.subr.bf16.mxu0 0
        %551 = vmatpush1.bf16.xpose.msra.mxu0 0
        %552 = vmatprep.subr.bf16.mxu0 0
        %553 = vmatpush1.bf16.xpose.msra.mxu0 0
        %554 = vmatprep.subr.bf16.mxu0 0
        %555 = vmatpush1.bf16.xpose.msra.mxu0 0
        %556 = vmatprep.subr.bf16.mxu0 0
        %557 = vmatpush1.bf16.xpose.msra.mxu0 0
        %558 = vmatprep.subr.bf16.mxu0 0
        %559 = vmatpush1.bf16.xpose.msra.mxu0 0
        %560 = vmatprep.subr.bf16.mxu0 0
        %561 = vmatpush1.bf16.xpose.msra.mxu0 0
        %562 = vmatprep.subr.bf16.mxu0 0
        %563 = vmatpush1.bf16.xpose.msra.mxu0 0
        %564 = vmatprep.subr.bf16.mxu0 0
        %565 = vmatpush1.bf16.xpose.msra.mxu0 0
        %566 = vmatprep.subr.bf16.mxu0 0
        %567 = vmatpush1.bf16.xpose.msra.mxu0 0
        %568 = vmatprep.subr.bf16.mxu0 0
        %569 = vmatpush1.bf16.xpose.msra.mxu0 0
        %570 = vmatprep.subr.bf16.mxu0 0
        %571 = vmatpush1.bf16.xpose.msra.mxu0 0
        %572 = vmatprep.subr.bf16.mxu0 0
        %573 = vmatpush1.bf16.xpose.msra.mxu0 0
        %574 = vmatprep.subr.bf16.mxu0 0
        %575 = vmatpush1.bf16.xpose.msra.mxu0 0
        %576 = vmatprep.subr.bf16.mxu0 0
        %577 = vmatpush1.bf16.xpose.msra.mxu0 0
        %578 = vmatprep.subr.bf16.mxu0 0
        %579 = vmatpush1.bf16.xpose.msra.mxu0 0
        %580 = vmatprep.mubr.bf16.mxu0 0
        %581 = vmatmul.mubr.bf16.gmra.mrb[0].mxu0 %v543
        %v582 = vpop.f32.mrb[0].mxu0
        %v583 = vadd.f32 0.0, %v582
        %v584 = vpop.f32.mrb[0].mxu0
        %v585 = vpop.f32.mrb[0].mxu0
        %v586 = vpop.f32.mrb[0].mxu0
        %587 = vdwg.mxu0
        %v588 = vsel %vm430, %v583, -inf
        %589 = vmax.xlane.f32.xlu0 %v588
        %v590 = vpop.xlane.xlu0 %589
        %v591 = vsub.f32 %v583, %v590
        %v592 = vmul.f32 %v591, 1.442695
        %v593 = vpow.pop %v592
        %v594 = vsel %vm430, %v593, 0.0
        %595 = vadd.xlane.f32.xlu0 %v594
        %v596 = vpop.xlane.xlu0 %595
        %v597 = vrcp.pop %v596
        %v598 = vmul.f32 %v593, %v597
        %v599 = vpack.c.bf16 %v598, %v598
        %600 = vrot.lane.b32.xlu0 %v427, 56
        %v601 = vpop.permute.xlu0 %600
        %v603 = vsel %vm430, %v599, 0
        %v606 = vsel %vm494, %v601, 0
        %608 = vmatprep.subr.bf16.mxu0 0
        %609 = vmatpush1.bf16.msra.mxu0 %v606
        %610 = vmatprep.subr.bf16.mxu0 0
        %611 = vmatpush1.bf16.msra.mxu0 0
        %612 = vmatprep.subr.bf16.mxu0 0
        %613 = vmatpush1.bf16.msra.mxu0 0
        %614 = vmatprep.subr.bf16.mxu0 0
        %615 = vmatpush1.bf16.msra.mxu0 0
        %616 = vmatprep.subr.bf16.mxu0 0
        %617 = vmatpush1.bf16.msra.mxu0 0
        %618 = vmatprep.subr.bf16.mxu0 0
        %619 = vmatpush1.bf16.msra.mxu0 0
        %620 = vmatprep.subr.bf16.mxu0 0
        %621 = vmatpush1.bf16.msra.mxu0 0
        %622 = vmatprep.subr.bf16.mxu0 0
        %623 = vmatpush1.bf16.msra.mxu0 0
        %624 = vmatprep.subr.bf16.mxu0 0
        %625 = vmatpush1.bf16.msra.mxu0 0
        %626 = vmatprep.subr.bf16.mxu0 0
        %627 = vmatpush1.bf16.msra.mxu0 0
        %628 = vmatprep.subr.bf16.mxu0 0
        %629 = vmatpush1.bf16.msra.mxu0 0
        %630 = vmatprep.subr.bf16.mxu0 0
        %631 = vmatpush1.bf16.msra.mxu0 0
        %632 = vmatprep.subr.bf16.mxu0 0
        %633 = vmatpush1.bf16.msra.mxu0 0
        %634 = vmatprep.subr.bf16.mxu0 0
        %635 = vmatpush1.bf16.msra.mxu0 0
        %636 = vmatprep.subr.bf16.mxu0 0
        %637 = vmatpush1.bf16.msra.mxu0 0
        %638 = vmatprep.subr.bf16.mxu0 0
        %639 = vmatpush1.bf16.msra.mxu0 0
        %640 = vmatprep.mubr.bf16.mxu0 0
        %641 = vmatmul.mubr.bf16.gmra.mrb[0].mxu0 %v603
        %v642 = vpop.f32.mrb[0].mxu0
        %v643 = vadd.f32 0.0, %v642
        %v644 = vpop.f32.mrb[0].mxu0
        %v645 = vpop.f32.mrb[0].mxu0
        %v646 = vpop.f32.mrb[0].mxu0
        %647 = vdwg.mxu0
        %649 = vrot.lane.b32.xlu0 %v643, 8
        %v650 = vpop.permute.xlu0 %649
        %v652 = vsel %vm430, %v533, %v650
        %v653 = vpack.c.bf16 %v652, %v652
        %vm654 = vcmask 125952
        %655 = vst.msk [vmem:[#allocation3] sm:$0xf] %vm654, %v653
        %v656 = vld [vmem:[#allocation2] sm:$0xf]
        %v658 = vunpack.c.l.b16 %v656
        %v659 = vpack.c.b16 %v658, %v658
        %660 = vrot.lane.b32.xlu0 %v659, 112
        %v661 = vpop.permute.xlu0 %660
        %662 = vrot.lane.b32.xlu0 %v659, 80
        %v663 = vpop.permute.xlu0 %662
        %v665 = vsel %vm430, %v661, 0
        %v668 = vsel %vm430, %v663, 0
        %670 = vmatprep.subr.bf16.mxu0 0
        %671 = vmatpush1.bf16.xpose.msra.mxu0 %v668
        %672 = vmatprep.subr.bf16.mxu0 0
        %673 = vmatpush1.bf16.xpose.msra.mxu0 0
        %674 = vmatprep.subr.bf16.mxu0 0
        %675 = vmatpush1.bf16.xpose.msra.mxu0 0
        %676 = vmatprep.subr.bf16.mxu0 0
        %677 = vmatpush1.bf16.xpose.msra.mxu0 0
        %678 = vmatprep.subr.bf16.mxu0 0
        %679 = vmatpush1.bf16.xpose.msra.mxu0 0
        %680 = vmatprep.subr.bf16.mxu0 0
        %681 = vmatpush1.bf16.xpose.msra.mxu0 0
        %682 = vmatprep.subr.bf16.mxu0 0
        %683 = vmatpush1.bf16.xpose.msra.mxu0 0
        %684 = vmatprep.subr.bf16.mxu0 0
        %685 = vmatpush1.bf16.xpose.msra.mxu0 0
        %686 = vmatprep.subr.bf16.mxu0 0
        %687 = vmatpush1.bf16.xpose.msra.mxu0 0
        %688 = vmatprep.subr.bf16.mxu0 0
        %689 = vmatpush1.bf16.xpose.msra.mxu0 0
        %690 = vmatprep.subr.bf16.mxu0 0
        %691 = vmatpush1.bf16.xpose.msra.mxu0 0
        %692 = vmatprep.subr.bf16.mxu0 0
        %693 = vmatpush1.bf16.xpose.msra.mxu0 0
        %694 = vmatprep.subr.bf16.mxu0 0
        %695 = vmatpush1.bf16.xpose.msra.mxu0 0
        %696 = vmatprep.subr.bf16.mxu0 0
        %697 = vmatpush1.bf16.xpose.msra.mxu0 0
        %698 = vmatprep.subr.bf16.mxu0 0
        %699 = vmatpush1.bf16.xpose.msra.mxu0 0
        %700 = vmatprep.subr.bf16.mxu0 0
        %701 = vmatpush1.bf16.xpose.msra.mxu0 0
        %702 = vmatprep.mubr.bf16.mxu0 0
        %703 = vmatmul.mubr.bf16.gmra.mrb[0].mxu0 %v665
        %v704 = vpop.f32.mrb[0].mxu0
        %v705 = vadd.f32 0.0, %v704
        %v706 = vpop.f32.mrb[0].mxu0
        %v707 = vpop.f32.mrb[0].mxu0
        %v708 = vpop.f32.mrb[0].mxu0
        %709 = vdwg.mxu0
        %v710 = vsel %vm430, %v705, -inf
        %711 = vmax.xlane.f32.xlu0 %v710
        %v712 = vpop.xlane.xlu0 %711
        %v713 = vsub.f32 %v705, %v712
        %v714 = vmul.f32 %v713, 1.442695
        %v715 = vpow.pop %v714
        %v716 = vsel %vm430, %v715, 0.0
        %717 = vadd.xlane.f32.xlu0 %v716
        %v718 = vpop.xlane.xlu0 %717
        %v719 = vrcp.pop %v718
        %v720 = vmul.f32 %v715, %v719
        %v721 = vpack.c.bf16 %v720, %v720
        %722 = vrot.lane.b32.xlu0 %v659, 48
        %v723 = vpop.permute.xlu0 %722
        %v725 = vsel %vm430, %v721, 0
        %v728 = vsel %vm494, %v723, 0
        %730 = vmatprep.subr.bf16.mxu0 0
        %731 = vmatpush1.bf16.msra.mxu0 %v728
        %732 = vmatprep.subr.bf16.mxu0 0
        %733 = vmatpush1.bf16.msra.mxu0 0
        %734 = vmatprep.subr.bf16.mxu0 0
        %735 = vmatpush1.bf16.msra.mxu0 0
        %736 = vmatprep.subr.bf16.mxu0 0
        %737 = vmatpush1.bf16.msra.mxu0 0
        %738 = vmatprep.subr.bf16.mxu0 0
        %739 = vmatpush1.bf16.msra.mxu0 0
        %740 = vmatprep.subr.bf16.mxu0 0
        %741 = vmatpush1.bf16.msra.mxu0 0
        %742 = vmatprep.subr.bf16.mxu0 0
        %743 = vmatpush1.bf16.msra.mxu0 0
        %744 = vmatprep.subr.bf16.mxu0 0
        %745 = vmatpush1.bf16.msra.mxu0 0
        %746 = vmatprep.subr.bf16.mxu0 0
        %747 = vmatpush1.bf16.msra.mxu0 0
        %748 = vmatprep.subr.bf16.mxu0 0
        %749 = vmatpush1.bf16.msra.mxu0 0
        %750 = vmatprep.subr.bf16.mxu0 0
        %751 = vmatpush1.bf16.msra.mxu0 0
        %752 = vmatprep.subr.bf16.mxu0 0
        %753 = vmatpush1.bf16.msra.mxu0 0
        %754 = vmatprep.subr.bf16.mxu0 0
        %755 = vmatpush1.bf16.msra.mxu0 0
        %756 = vmatprep.subr.bf16.mxu0 0
        %757 = vmatpush1.bf16.msra.mxu0 0
        %758 = vmatprep.subr.bf16.mxu0 0
        %759 = vmatpush1.bf16.msra.mxu0 0
        %760 = vmatprep.subr.bf16.mxu0 0
        %761 = vmatpush1.bf16.msra.mxu0 0
        %762 = vmatprep.mubr.bf16.mxu0 0
        %763 = vmatmul.mubr.bf16.gmra.mrb[0].mxu0 %v725
        %v764 = vpop.f32.mrb[0].mxu0
        %v765 = vadd.f32 0.0, %v764
        %v766 = vpop.f32.mrb[0].mxu0
        %v767 = vpop.f32.mrb[0].mxu0
        %v768 = vpop.f32.mrb[0].mxu0
        %769 = vdwg.mxu0
        %770 = vrot.lane.b32.xlu0 %v659, 104
        %v771 = vpop.permute.xlu0 %770
        %772 = vrot.lane.b32.xlu0 %v659, 72
        %v773 = vpop.permute.xlu0 %772
        %v775 = vsel %vm430, %v771, 0
        %v778 = vsel %vm430, %v773, 0
        %780 = vmatprep.subr.bf16.mxu0 0
        %781 = vmatpush1.bf16.xpose.msra.mxu0 %v778
        %782 = vmatprep.subr.bf16.mxu0 0
        %783 = vmatpush1.bf16.xpose.msra.mxu0 0
        %784 = vmatprep.subr.bf16.mxu0 0
        %785 = vmatpush1.bf16.xpose.msra.mxu0 0
        %786 = vmatprep.subr.bf16.mxu0 0
        %787 = vmatpush1.bf16.xpose.msra.mxu0 0
        %788 = vmatprep.subr.bf16.mxu0 0
        %789 = vmatpush1.bf16.xpose.msra.mxu0 0
        %790 = vmatprep.subr.bf16.mxu0 0
        %791 = vmatpush1.bf16.xpose.msra.mxu0 0
        %792 = vmatprep.subr.bf16.mxu0 0
        %793 = vmatpush1.bf16.xpose.msra.mxu0 0
        %794 = vmatprep.subr.bf16.mxu0 0
        %795 = vmatpush1.bf16.xpose.msra.mxu0 0
        %796 = vmatprep.subr.bf16.mxu0 0
        %797 = vmatpush1.bf16.xpose.msra.mxu0 0
        %798 = vmatprep.subr.bf16.mxu0 0
        %799 = vmatpush1.bf16.xpose.msra.mxu0 0
        %800 = vmatprep.subr.bf16.mxu0 0
        %801 = vmatpush1.bf16.xpose.msra.mxu0 0
        %802 = vmatprep.subr.bf16.mxu0 0
        %803 = vmatpush1.bf16.xpose.msra.mxu0 0
        %804 = vmatprep.subr.bf16.mxu0 0
        %805 = vmatpush1.bf16.xpose.msra.mxu0 0
        %806 = vmatprep.subr.bf16.mxu0 0
        %807 = vmatpush1.bf16.xpose.msra.mxu0 0
        %808 = vmatprep.subr.bf16.mxu0 0
        %809 = vmatpush1.bf16.xpose.msra.mxu0 0
        %810 = vmatprep.subr.bf16.mxu0 0
        %811 = vmatpush1.bf16.xpose.msra.mxu0 0
        %812 = vmatprep.mubr.bf16.mxu0 0
        %813 = vmatmul.mubr.bf16.gmra.mrb[0].mxu0 %v775
        %v814 = vpop.f32.mrb[0].mxu0
        %v815 = vadd.f32 0.0, %v814
        %v816 = vpop.f32.mrb[0].mxu0
        %v817 = vpop.f32.mrb[0].mxu0
        %v818 = vpop.f32.mrb[0].mxu0
        %819 = vdwg.mxu0
        %v820 = vsel %vm430, %v815, -inf
        %821 = vmax.xlane.f32.xlu0 %v820
        %v822 = vpop.xlane.xlu0 %821
        %v823 = vsub.f32 %v815, %v822
        %v824 = vmul.f32 %v823, 1.442695
        %v825 = vpow.pop %v824
        %v826 = vsel %vm430, %v825, 0.0
        %827 = vadd.xlane.f32.xlu0 %v826
        %v828 = vpop.xlane.xlu0 %827
        %v829 = vrcp.pop %v828
        %v830 = vmul.f32 %v825, %v829
        %v831 = vpack.c.bf16 %v830, %v830
        %832 = vrot.lane.b32.xlu0 %v659, 40
        %v833 = vpop.permute.xlu0 %832
        %v835 = vsel %vm430, %v831, 0
        %v838 = vsel %vm494, %v833, 0
        %840 = vmatprep.subr.bf16.mxu0 0
        %841 = vmatpush1.bf16.msra.mxu0 %v838
        %842 = vmatprep.subr.bf16.mxu0 0
        %843 = vmatpush1.bf16.msra.mxu0 0
        %844 = vmatprep.subr.bf16.mxu0 0
        %845 = vmatpush1.bf16.msra.mxu0 0
        %846 = vmatprep.subr.bf16.mxu0 0
        %847 = vmatpush1.bf16.msra.mxu0 0
        %848 = vmatprep.subr.bf16.mxu0 0
        %849 = vmatpush1.bf16.msra.mxu0 0
        %850 = vmatprep.subr.bf16.mxu0 0
        %851 = vmatpush1.bf16.msra.mxu0 0
        %852 = vmatprep.subr.bf16.mxu0 0
        %853 = vmatpush1.bf16.msra.mxu0 0
        %854 = vmatprep.subr.bf16.mxu0 0
        %855 = vmatpush1.bf16.msra.mxu0 0
        %856 = vmatprep.subr.bf16.mxu0 0
        %857 = vmatpush1.bf16.msra.mxu0 0
        %858 = vmatprep.subr.bf16.mxu0 0
        %859 = vmatpush1.bf16.msra.mxu0 0
        %860 = vmatprep.subr.bf16.mxu0 0
        %861 = vmatpush1.bf16.msra.mxu0 0
        %862 = vmatprep.subr.bf16.mxu0 0
        %863 = vmatpush1.bf16.msra.mxu0 0
        %864 = vmatprep.subr.bf16.mxu0 0
        %865 = vmatpush1.bf16.msra.mxu0 0
        %866 = vmatprep.subr.bf16.mxu0 0
        %867 = vmatpush1.bf16.msra.mxu0 0
        %868 = vmatprep.subr.bf16.mxu0 0
        %869 = vmatpush1.bf16.msra.mxu0 0
        %870 = vmatprep.subr.bf16.mxu0 0
        %871 = vmatpush1.bf16.msra.mxu0 0
        %872 = vmatprep.mubr.bf16.mxu0 0
        %873 = vmatmul.mubr.bf16.gmra.mrb[0].mxu0 %v835
        %v874 = vpop.f32.mrb[0].mxu0
        %v875 = vadd.f32 0.0, %v874
        %v876 = vpop.f32.mrb[0].mxu0
        %v877 = vpop.f32.mrb[0].mxu0
        %v878 = vpop.f32.mrb[0].mxu0
        %879 = vdwg.mxu0
        %881 = vrot.lane.b32.xlu0 %v875, 8
        %v882 = vpop.permute.xlu0 %881
        %v884 = vsel %vm430, %v765, %v882
        %v885 = vpack.c.bf16 %v884, %v884
        %v887 = vunpack.c.l.b16 %v885
        %v888 = vpack.c.b16 %v887, %v887
        %889 = vrot.lane.b32.xlu0 %v888, 16
        %v890 = vpop.permute.xlu0 %889
        %vm892 = vcmask 257152
        %893 = vst.msk [vmem:[#allocation3] sm:$0xf] %vm892, %v890
        %v894 = vld [vmem:[#allocation3] sm:$0xf]
        %v895 = vld [vmem:[%s5] sm:$0xf]
        %v896 = vld [vmem:[%s5 + $0x4] sm:$0xf]
        %v897 = vld [vmem:[%s5 + $0x8] sm:$0xf]
        %v898 = vld [vmem:[%s5 + $0xc] sm:$0xf]
        %v899 = vld [vmem:[%s6] sm:$0x1]
        %v901 = vlaneseq
        %v902 = vshrl.u32 %v901, 7
        %v903 = vsub.s32 0, %v902
        %v904 = vrot.slane %v899, %v903
        %v910 = vunpack.c.l.b16 %v895
        %v911 = vunpack.c.l.b16 %v896
        %v912 = vunpack.c.l.b16 %v897
        %v913 = vunpack.c.l.b16 %v898
        %v914 = vpack.c.b16 %v911, %v910
        %v915 = vpack.c.b16 %v913, %v912
        %v919 = vsel %vm325, %v894, 0
        %921 = vmatprep.subr.bf16.mxu0 0
        %922 = vmatpush1.bf16.msra.mxu0 %v914
        %923 = vmatprep.subr.bf16.mxu0 0
        %924 = vmatpush1.bf16.msra.mxu0 %v915
        %925 = vmatprep.subr.bf16.mxu0 0
        %926 = vmatpush1.bf16.msra.mxu0 0
        %927 = vmatprep.subr.bf16.mxu0 0
        %928 = vmatpush1.bf16.msra.mxu0 0
        %929 = vmatprep.subr.bf16.mxu0 0
        %930 = vmatpush1.bf16.msra.mxu0 0
        %931 = vmatprep.subr.bf16.mxu0 0
        %932 = vmatpush1.bf16.msra.mxu0 0
        %933 = vmatprep.subr.bf16.mxu0 0
        %934 = vmatpush1.bf16.msra.mxu0 0
        %935 = vmatprep.subr.bf16.mxu0 0
        %936 = vmatpush1.bf16.msra.mxu0 0
        %937 = vmatprep.subr.bf16.mxu0 0
        %938 = vmatpush1.bf16.msra.mxu0 0
        %939 = vmatprep.subr.bf16.mxu0 0
        %940 = vmatpush1.bf16.msra.mxu0 0
        %941 = vmatprep.subr.bf16.mxu0 0
        %942 = vmatpush1.bf16.msra.mxu0 0
        %943 = vmatprep.subr.bf16.mxu0 0
        %944 = vmatpush1.bf16.msra.mxu0 0
        %945 = vmatprep.subr.bf16.mxu0 0
        %946 = vmatpush1.bf16.msra.mxu0 0
        %947 = vmatprep.subr.bf16.mxu0 0
        %948 = vmatpush1.bf16.msra.mxu0 0
        %949 = vmatprep.subr.bf16.mxu0 0
        %950 = vmatpush1.bf16.msra.mxu0 0
        %951 = vmatprep.subr.bf16.mxu0 0
        %952 = vmatpush1.bf16.msra.mxu0 0
        %953 = vmatprep.mubr.bf16.mxu0 0
        %954 = vmatmul.mubr.bf16.gmra.mrb[0].mxu0 %v919
        %v955 = vpop.f32.mrb[0].mxu0
        %v956 = vadd.f32 %v904, %v955
        %v957 = vpop.f32.mrb[0].mxu0
        %v958 = vpop.f32.mrb[0].mxu0
        %v959 = vpop.f32.mrb[0].mxu0
        %960 = vdwg.mxu0
        %v961 = vadd.f32 %v322, %v956
        %962 = vst.msk [vmem:[%s320] sm:$0xff] %vm325, %v961
        %s963 = sand.u32 %s185, 1
        %s964 = scalar_lea.sflag [#allocation6], %s963
        %s965 = sand.u32 %s185, 1
        %s966 = smul.addr %s965, 8
        %s967 = scalar_lea.vmem [#allocation10], %s966
        // Predicated region
        $region61: #{tpu_custom_call.1} parent=47 // pred_check
          %p968 = pneg %p195
        $region62: #{tpu_custom_call.1} parent=47 // pred_check_branch
          %970 = sbr.rel (%p968) target = $region64
        $region63: #{tpu_custom_call.1} parent=47 // pred_region
          %s972 = ssub.s32 128, 128
          %973 = vsyncadd %s964, %s972
          %s974 = smul.addr %s25, 128
          %s975 = scalar_lea.hbm %s7, %s974
          %s977 = sshll.u32 %s967, 4
          %s978 = int_to_ptr.vmem [resolvable:$true] %s977
          %980 = dma.vmem_to_hbm [thread:$0]  %s978, 128, %s975, %s964
        $region64: #{tpu_custom_call.1} parent=47 // pred_fallthru
          _
      $region48: #{tpu_custom_call.1} parent=5 // pred_fallthru
        _
      %p981 = scmp.le.s32.totalorder 2, %s20
      // Predicated region
      $region65: #{tpu_custom_call.1} parent=5 // pred_check
        %p982 = pneg %p981
      $region66: #{tpu_custom_call.1} parent=5 // pred_check_branch
        %984 = sbr.rel (%p982) target = $region68
      $region67: #{tpu_custom_call.1} parent=5 // pred_region
        %s985 = ssub.s32 %s20, 2
        // Predicated region
        $region69: #{tpu_custom_call.1} parent=67 // pred_check
          %p986 = pneg %p201
        $region70: #{tpu_custom_call.1} parent=67 // pred_check_branch
          %988 = sbr.rel (%p986) target = $region72
        $region71: #{tpu_custom_call.1} parent=67 // pred_region
          %s989 = sand.u32 %s186, 1
          %s990 = scalar_lea.sflag [#allocation6], %s989
          %s991 = sand.u32 %s186, 1
          %s992 = smul.addr %s991, 8
          %s993 = scalar_lea.vmem [#allocation10], %s992
          %994 = dma.done %s990, 128
        $region72: #{tpu_custom_call.1} parent=67 // pred_fallthru
          _
      $region68: #{tpu_custom_call.1} parent=5 // pred_fallthru
        _
    $region6: #{tpu_custom_call.1} parent=1 // loop_footer
      %s24 = sadd.s32 1, %s20
    $region7: #{tpu_custom_call.1} parent=1 // loop_footer_branch
      %19 = sbr.rel target = $region3
    $region8: #{tpu_custom_call.1} parent=1 // loop_exit
      _
    %995 = vsyncpa [#allocation5], 1
    %s996 = scalar_lea.sflag [#allocation5], 1
    %997 = vsyncpa %s996, 1
    %998 = vsyncpa [#allocation8], 1
    %999 = vsyncpa [#allocation6], 1
    %s1000 = scalar_lea.sflag [#allocation6], 1
    %1001 = vsyncpa %s1000, 1

</llo_original>
